<compile_context>
chip_gen: v7x
topology: tpu7x:2x2x1
jax: 0.10.0
libtpu: 0.0.40
codegen_flags: <defaults>
</compile_context>

<pallas_src>
import functools
import math

import jax
import jax.numpy as jnp
from jax import lax
from jax.experimental import pallas as pl
from jax.experimental.pallas import tpu as pltpu

ALPHA = 0.2      # hparams.alpha (LeakyReLU slope)
NEG_BIG = -1e30  # mask fill (kept in f32; never cast to bf16)


# ---------------- in-kernel helpers (traced inline) ----------------

def _eye(n, dtype=jnp.float32):
    r = lax.broadcasted_iota(jnp.int32, (n, n), 0)
    c = lax.broadcasted_iota(jnp.int32, (n, n), 1)
    return (r == c).astype(dtype)


def _mm(a, b):        # a @ b
    return lax.dot_general(a, b, (((1,), (0,)), ((), ())),
                           preferred_element_type=jnp.float32)


def _mm_tl(a, b):     # a.T @ b
    return lax.dot_general(a, b, (((0,), (0,)), ((), ())),
                           preferred_element_type=jnp.float32)


def _mm_tr(a, b):     # a @ b.T
    return lax.dot_general(a, b, (((1,), (1,)), ((), ())),
                           preferred_element_type=jnp.float32)


def _gcn_post(x, adj_post, w, b):
    """GraphConvolution with the self-loop already folded into adj_post:
       D^-1/2 adj_post D^-1/2 (x W) + b,  D = rowsum(|adj_post|)."""
    deg = jnp.sum(jnp.abs(adj_post), axis=1, keepdims=True)      # [n,1]
    dsq = lax.rsqrt(deg)
    support = _mm(x, w)
    return dsq * _mm(adj_post, dsq * support) + b


# ---------------- kernel 1: pooled reductions + Ns/Nf-sized GCN / gate work ----------------

def prologue_ab_kernel(sa_ref, feat_ref, sadj_ref, fa_ref,
                       wf_ref, bf_ref, ws_ref, bs_ref,
                       lcw1_ref, lcw2_ref, lcb_ref,
                       semb_ref, rf_ref,
                       u_acc, cs_acc):
    i = pl.program_id(0)

    @pl.when(i == 0)
    def _():
        u_acc[...] = jnp.zeros_like(u_acc)
        cs_acc[...] = jnp.zeros_like(cs_acc)

    sa = sa_ref[...]                                            # [TB, Ns] (padded rows are 0)
    u_acc[...] += _mm_tl(sa, feat_ref[...])                     # [Ns, H]   sa.T @ raw_feat
    cs_acc[...] += _mm_tl(sa, jnp.ones((sa.shape[0], 1), jnp.float32))   # [Ns,1] column sums

    @pl.when(i == pl.num_programs(0) - 1)
    def _():
        # struct_emb = (sa / colnorm).T @ raw_feat, done as a row-scale of the pooled sum.
        inv_d = 1.0 / (jnp.maximum(cs_acc[...] - 1.0, 0.0) + 1.0)         # [Ns,1]
        struct_emb = inv_d * u_acc[...]                                   # [Ns,H]

        fa_raw = fa_ref[...]                                              # [Ns,Nf]
        fa = fa_raw / (jnp.maximum(jnp.sum(fa_raw, axis=0, keepdims=True) - 1.0, 0.0) + 1.0)

        # functional-zone graph + GCN (both +I folded: sigmoid(..) + 2I)
        fnc_emb = _mm_tl(fa, struct_emb)                                  # [Nf,H]
        nf = fnc_emb.shape[0]
        fnc_adj_post = jax.nn.sigmoid(_mm_tr(fnc_emb, fnc_emb)) + 2.0 * _eye(nf)
        fnc_emb = _gcn_post(fnc_emb, fnc_adj_post, wf_ref[...], bf_ref[...])

        # functional message to structural level
        denom = jnp.maximum(jnp.sum(fa, axis=1, keepdims=True) - 1.0, 0.0) + 1.0   # [Ns,1]
        fnc_message = _mm(fa_raw, fnc_emb) / denom                                  # [Ns,H]

        rf_ref[...] = jax.nn.sigmoid(_mm(struct_emb, lcw1_ref[...])
                                     + _mm(fnc_message, lcw2_ref[...])
                                     + lcb_ref[...])

        struct_emb = struct_emb + 0.15 * fnc_message

        # structural graph + GCN (relu(adj - 1e4 I) + I, plus the norm's +I => +2I)
        ns = struct_emb.shape[0]
        eye_s = _eye(ns)
        struct_adj_post = jnp.maximum(sadj_ref[...] - eye_s * 10000.0, 0.0) + 2.0 * eye_s
        semb_ref[...] = _gcn_post(struct_emb, struct_adj_post, ws_ref[...], bs_ref[...])


# ---------------- kernel 2: per-node-block projections ----------------

def prologue_c_kernel(feat_ref, sa_ref, semb_ref,
                      lsw1_ref, lsw2_ref, lsb_ref,
                      wg_ref, wa1_ref, wa2_ref,
                      h_ref, srow_ref, scol_ref, rs_ref):
    raw_feat = feat_ref[...]                                     # [TB,H]
    struct_message = _mm(sa_ref[...], semb_ref[...])             # [TB,H]  sa_raw @ struct_emb
    rs_ref[...] = jax.nn.sigmoid(_mm(raw_feat, lsw1_ref[...])
                                 + _mm(struct_message, lsw2_ref[...])
                                 + lsb_ref[...])
    feat = raw_feat + 0.5 * struct_message
    # W is zero-padded to Hp lanes -> h already lane-padded; padded node rows give h == 0.
    h_ref[...] = _mm(feat, wg_ref[...]).astype(jnp.bfloat16)     # [TB,Hp]  V operand (bf16)
    srow_ref[...] = _mm(feat, wa1_ref[...])                      # [TB,1]  = h @ a1 (folded)
    scol_ref[...] = _mm(feat, wa2_ref[...])                      # [TB,1]  = h @ a2.T (folded)


# ---------------- kernel 3: tiled flash-style SPGAT ----------------

def gat_kernel(mask_ref, srow_ref, scol_ref, h_ref, out_ref, m_sc, l_sc,
               *, tk, n_valid, ragged, resident):
    k = pl.program_id(1)

    @pl.when(k == 0)
    def _():
        m_sc[...] = jnp.full_like(m_sc, NEG_BIG)
        l_sc[...] = jnp.zeros_like(l_sc)
        out_ref[...] = jnp.zeros_like(out_ref)                   # accumulate directly in out

    maskb = mask_ref[...] > 0                                    # [TQ,TK] bool (int8 input)
    if ragged:
        # unpadded mask: kill the stale/out-of-range key columns of partial tiles
        cols = k * tk + lax.broadcasted_iota(jnp.int32, maskb.shape, 1)
        maskb = maskb & (cols < n_valid)

    s = srow_ref[...] + scol_ref[...]                            # [TQ,1]+[1,TK] -> [TQ,TK] f32
    s = jnp.where(s >= 0.0, s, ALPHA * s)                        # LeakyReLU
    masked = jnp.where(maskb, s, NEG_BIG)

    m_new = jnp.maximum(m_sc[...], jnp.max(masked, axis=-1, keepdims=True))   # [TQ,1]
    a = jnp.exp(m_sc[...] - m_new)                                            # rescale
    # in-mask lanes always have s <= m_new, so the exp never overflows where it is kept;
    # out-of-mask lanes are discarded by the select.
    ev = jnp.where(maskb, jnp.exp(s - m_new), 0.0)                            # [TQ,TK] f32

    l_sc[...] = a * l_sc[...] + jnp.sum(ev, axis=-1, keepdims=True)

    if resident:
        start = pl.multiple_of(k * tk, tk)
        hk = h_ref[pl.ds(start, tk), :]                          # slice of VMEM-resident h
    else:
        hk = h_ref[...]                                          # streamed (TK,Hp) slab
    out_ref[...] = a * out_ref[...] + lax.dot_general(
        ev.astype(jnp.bfloat16), hk,                             # bf16 x bf16 -> f32 acc (MXU)
        (((1,), (0,)), ((), ())), preferred_element_type=jnp.float32)
    m_sc[...] = m_new

    @pl.when(k == pl.num_programs(1) - 1)
    def _():
        hp = out_ref[...] * pl.reciprocal(l_sc[...] + 1e-15, approx=True)
        # ELU (concat=True branch)
        out_ref[...] = jnp.where(hp > 0.0, hp, jnp.exp(jnp.minimum(hp, 0.0)) - 1.0)


# ---------------- wrapper ----------------

def _round_up(x, m):
    return ((x + m - 1) // m) * m


def graph_encoder_tl_core(struct_adj, raw_feat, adj_mask, struct_assign, fnc_assign, p,
                          *, tq=256, tk=512):
    """adj_mask: int8 (or bool) dense 0/1 edge mask standing in for the sparse COO raw_adj."""
    Nn, H = raw_feat.shape
    Ns = struct_assign.shape[1]
    Nf = fnc_assign.shape[1]
    adj_mask = adj_mask.astype(jnp.int8)

    Hp = _round_up(H, 128)
    N128 = _round_up(Nn, 128)
    TK = min(tk, N128)                       # key tile (multiple of 256 when the problem allows)
    TQ = min(tq, N128)                       # query tile
    # keep >=2 row blocks when possible so both v7x TensorCores stay busy
    while TQ > 128 and pl.cdiv(Nn, TQ) < 2:
        TQ //= 2
    Np = _round_up(Nn, math.lcm(TQ, TK))
    TB = TQ                                  # node tile for the gridded prologue stages
    ragged = Np != Nn

    # pad only the O(Nn*H)/O(Nn*Ns) node arrays (cheap); the O(Nn^2) mask is consumed
    # unpadded -- its ragged tail is handled inside the GAT kernel.
    if ragged:
        feat_p = jnp.pad(raw_feat, ((0, Np - Nn), (0, 0)))
        sa_p = jnp.pad(struct_assign, ((0, Np - Nn), (0, 0)))
    else:
        feat_p, sa_p = raw_feat, struct_assign

    # fold W@a1 / W@a2^T (one-time, O(H^2)); zero-pad W to 128 lanes so h is lane-padded.
    wa1 = p["w_gat"] @ p["a1"]                          # [H,1]
    wa2 = p["w_gat"] @ p["a2"].T                        # [H,1]
    wg_p = jnp.pad(p["w_gat"], ((0, 0), (0, Hp - H)))   # [H,Hp]

    def _r(shape):                                      # full-array VMEM-resident block
        nd = len(shape)
        return pl.BlockSpec(shape, lambda i: (0,) * nd)

    # ---- stage 1: pooling reduction over node blocks + small GCN/gate work ----
    struct_emb, r_f = pl.pallas_call(
        prologue_ab_kernel,
        out_shape=(jax.ShapeDtypeStruct((Ns, H), jnp.float32),
                   jax.ShapeDtypeStruct((Ns, 1), jnp.float32)),
        grid_spec=pltpu.PrefetchScalarGridSpec(
            num_scalar_prefetch=0, grid=(Np // TB,),
            in_specs=[pl.BlockSpec((TB, Ns), lambda i: (i, 0)),
                      pl.BlockSpec((TB, H), lambda i: (i, 0)),
                      _r((Ns, Ns)), _r((Ns, Nf)),
                      _r((H, H)), _r((1, H)), _r((H, H)), _r((1, H)),
                      _r((H, 1)), _r((H, 1)), _r((1, 1))],
            out_specs=(_r((Ns, H)), _r((Ns, 1))),
            scratch_shapes=[pltpu.VMEM((Ns, H), jnp.float32),
                            pltpu.VMEM((Ns, 1), jnp.float32)]),
        compiler_params=pltpu.CompilerParams(
            dimension_semantics=("arbitrary",)),
    )(sa_p, feat_p, struct_adj, fnc_assign,
      p["w_fnc"], p["b_fnc"], p["w_str"], p["b_str"],
      p["lc_w1"], p["lc_w2"], p["lc_b"])

    # ---- stage 2: per-node-block projections (parallel over node blocks) ----
    h_bf, s_row, s_col, r_s = pl.pallas_call(
        prologue_c_kernel,
        out_shape=(jax.ShapeDtypeStruct((Np, Hp), jnp.bfloat16),   # h (V operand, bf16)
                   jax.ShapeDtypeStruct((Np, 1), jnp.float32),     # s_row
                   jax.ShapeDtypeStruct((Np, 1), jnp.float32),     # s_col values
                   jax.ShapeDtypeStruct((Np, 1), jnp.float32)),    # r_s
        grid_spec=pltpu.PrefetchScalarGridSpec(
            num_scalar_prefetch=0, grid=(Np // TB,),
            in_specs=[pl.BlockSpec((TB, H), lambda i: (i, 0)),
                      pl.BlockSpec((TB, Ns), lambda i: (i, 0)),
                      _r((Ns, H)),
                      _r((H, 1)), _r((H, 1)), _r((1, 1)),
                      _r((H, Hp)), _r((H, 1)), _r((H, 1))],
            out_specs=(pl.BlockSpec((TB, Hp), lambda i: (i, 0)),
                       pl.BlockSpec((TB, 1), lambda i: (i, 0)),
                       pl.BlockSpec((TB, 1), lambda i: (i, 0)),
                       pl.BlockSpec((TB, 1), lambda i: (i, 0)))),
        compiler_params=pltpu.CompilerParams(
            dimension_semantics=("parallel",)),
    )(feat_p, sa_p, struct_emb,
      p["ls_w1"], p["ls_w2"], p["ls_b"], wg_p, wa1, wa2)

    # lane-dense (1, Np) layout of the per-key logits for the GAT (O(Np) bytes)
    s_col_row = s_col.reshape(1, Np)

    # ---- stage 3: tiled flash-style SPGAT ----
    resident_h = Np * Hp * 2 <= (16 << 20)         # resident h stays well inside v7x's 64 MiB
    if resident_h:
        h_spec = pl.BlockSpec((Np, Hp), lambda i, k: (0, 0))   # single HBM fetch, VMEM-resident
        h_bytes = Np * Hp * 2
    else:
        h_spec = pl.BlockSpec((TK, Hp), lambda i, k: (k, 0))   # streamed fallback (huge graphs)
        h_bytes = (Np // TQ) * Np * Hp * 2

    if ragged:
        nqi, nki = pl.cdiv(Nn, TQ) - 1, pl.cdiv(Nn, TK) - 1
        # clamp so DMA for fully-out-of-range blocks of the unpadded mask never issues;
        # the in-kernel column-validity compare discards whatever those tiles contain.
        mask_map = lambda i, k: (jnp.minimum(i, nqi), jnp.minimum(k, nki))
    else:
        mask_map = lambda i, k: (i, k)

    gat_out = pl.pallas_call(
        functools.partial(gat_kernel, tk=TK, n_valid=Nn,
                          ragged=ragged, resident=resident_h),
        out_shape=jax.ShapeDtypeStruct((Np, Hp), jnp.float32),
        grid_spec=pltpu.PrefetchScalarGridSpec(
            num_scalar_prefetch=0, grid=(Np // TQ, Np // TK),
            in_specs=[pl.BlockSpec((TQ, TK), mask_map),              # int8 mask slab (unpadded)
                      pl.BlockSpec((TQ, 1), lambda i, k: (i, 0)),    # s_row (Q block)
                      pl.BlockSpec((1, TK), lambda i, k: (0, k)),    # s_col (K block, lane-dense)
                      h_spec],                                       # h (resident or streamed)
            out_specs=pl.BlockSpec((TQ, Hp), lambda i, k: (i, 0)),   # doubles as accumulator
            scratch_shapes=[pltpu.VMEM((TQ, 1), jnp.float32),        # running max
                            pltpu.VMEM((TQ, 1), jnp.float32)]),      # running rowsum
        compiler_params=pltpu.CompilerParams(
            dimension_semantics=("parallel", "arbitrary"),           # rows split across TCs
            vmem_limit_bytes=48 * 1024 * 1024),                      # re-budgeted for v7x 64MiB
        cost_estimate=pl.CostEstimate(
            flops=2 * Np * Np * Hp + 10 * Np * Np,
            transcendentals=Np * Np + Np * Hp,
            bytes_accessed=Nn * Nn + h_bytes + Np * Hp * 4 + 12 * Np),
    )(adj_mask, s_row, s_col_row, h_bf)

    return gat_out[:Nn, :H], r_f, r_s[:Nn]


# ---------------- pure-JAX reference for verification ----------------

def reference(struct_adj, raw_feat, mask, sa_raw, fa_raw, p):
    def gcn(x, adj, w, b):
        n = adj.shape[0]
        adj_post = adj + jnp.eye(n, dtype=jnp.float32)
        d = jnp.sum(jnp.abs(adj_post), -1) ** -0.5
        norm_adj = d[:, None] * adj_post * d[None, :]
        return norm_adj @ (x @ w) + b

    sa = sa_raw / (jax.nn.relu(sa_raw.sum(0) - 1.0) + 1.0)
    fa = fa_raw / (jax.nn.relu(fa_raw.sum(0) - 1.0) + 1.0)
    struct_emb = sa.T @ raw_feat
    fnc_emb = fa.T @ struct_emb
    fnc_adj = jax.nn.sigmoid(fnc_emb @ fnc_emb.T) + jnp.eye(fnc_emb.shape[0])
    fnc_emb = gcn(fnc_emb, fnc_adj, p["w_fnc"], p["b_fnc"][0])
    fnc_message = (fa_raw @ fnc_emb) / (jax.nn.relu(fa.sum(1) - 1.0) + 1.0)[:, None]
    rf = jax.nn.sigmoid(struct_emb @ p["lc_w1"] + fnc_message @ p["lc_w2"] + p["lc_b"])
    struct_emb = struct_emb + 0.15 * fnc_message
    ns = struct_adj.shape[1]
    sadj = jax.nn.relu(struct_adj - jnp.eye(ns) * 10000.0) + jnp.eye(ns)
    struct_emb = gcn(struct_emb, sadj, p["w_str"], p["b_str"][0])
    struct_message = sa_raw @ struct_emb
    rs = jax.nn.sigmoid(raw_feat @ p["ls_w1"] + struct_message @ p["ls_w2"] + p["ls_b"])
    feat = raw_feat + 0.5 * struct_message
    h = feat @ p["w_gat"]
    scores = (h @ p["a1"]) + (h @ p["a2"].T).T
    scores = jnp.where(scores >= 0.0, scores, ALPHA * scores)
    masked = jnp.where(mask > 0, scores, -1e30)
    gmax = masked.max()
    ev = jnp.where(mask > 0, jnp.exp(jnp.minimum(scores - gmax, 0.0)), 0.0)
    rowsum = ev.sum(1, keepdims=True)
    h_prime = (ev @ h) / (rowsum + 1e-15)
    out = jnp.where(h_prime > 0.0, h_prime, jnp.exp(jnp.minimum(h_prime, 0.0)) - 1.0)
    return out, rf, rs


# ---------------- parameter init (deterministic, per torch __init__ shapes) ----------------

def init_params(key, H):
    ks = jax.random.split(key, 10)
    u = lambda k, s: jax.random.uniform(k, s, jnp.float32, -0.5, 0.5)   # GCN reset_parameters
    w_fnc, b_fnc = u(ks[0], (H, H)), u(ks[1], (1, H))
    w_str, b_str = u(ks[2], (H, H)), u(ks[3], (1, H))
    # SPGAT: xavier_normal_ with gain=1.414
    w_gat = jax.random.normal(ks[4], (H, H), jnp.float32) * (1.414 * (2.0 / (H + H)) ** 0.5)
    a = jax.random.normal(ks[5], (1, 2 * H), jnp.float32) * (1.414 * (2.0 / (1 + 2 * H)) ** 0.5)
    # nn.Linear(2H, 1) default init: U(-1/sqrt(2H), 1/sqrt(2H))
    bound = 1.0 / (2 * H) ** 0.5
    lc_w = jax.random.uniform(ks[6], (1, 2 * H), jnp.float32, -bound, bound)
    lc_b = jax.random.uniform(ks[7], (1, 1), jnp.float32, -bound, bound)
    ls_w = jax.random.uniform(ks[8], (1, 2 * H), jnp.float32, -bound, bound)
    ls_b = jax.random.uniform(ks[9], (1, 1), jnp.float32, -bound, bound)
    return dict(
        w_fnc=w_fnc, b_fnc=b_fnc, w_str=w_str, b_str=b_str,
        w_gat=w_gat,
        a1=a[:, :H].T,          # [H,1]
        a2=a[:, H:],            # [1,H]
        lc_w1=lc_w[:, :H].T, lc_w2=lc_w[:, H:].T, lc_b=lc_b,
        ls_w1=ls_w[:, :H].T, ls_w2=ls_w[:, H:].T, ls_b=ls_b,
    )


if __name__ == "__main__":
    # nodes, structural zones, functional zones, hidden_dims
    Nn, Ns, Nf, H = 256, 16, 8, 32

    key = jax.random.PRNGKey(0)
    k_sa, k_fa, k_feat, k_sadj, k_mask, k_par = jax.random.split(key, 6)

    struct_assign = jax.random.uniform(k_sa, (Nn, Ns), jnp.float32)      # module __init__ arg
    fnc_assign = jax.random.uniform(k_fa, (Ns, Nf), jnp.float32)         # module __init__ arg
    raw_feat = jax.random.normal(k_feat, (Nn, H), jnp.float32)
    struct_adj = jax.random.uniform(k_sadj, (Ns, Ns), jnp.float32)
    # dense int8 0/1 edge mask standing in for the sparse COO raw_adj (self-loops guarantee edges)
    adj_mask = ((jax.random.uniform(k_mask, (Nn, Nn), jnp.float32) < 0.05)
                | (jnp.eye(Nn) > 0)).astype(jnp.int8)

    params = init_params(k_par, H)

    out, r_f, r_s = graph_encoder_tl_core(struct_adj, raw_feat, adj_mask,
                                          struct_assign, fnc_assign, params)
    jax.block_until_ready(out)

    ref_out, ref_rf, ref_rs = reference(struct_adj, raw_feat, adj_mask,
                                        struct_assign, fnc_assign, params)
    assert jnp.allclose(out, ref_out, atol=2e-2, rtol=2e-2), "raw_feat mismatch"
    assert jnp.allclose(r_f, ref_rf, atol=2e-2, rtol=2e-2), "r_f mismatch"
    assert jnp.allclose(r_s, ref_rs, atol=2e-2, rtol=2e-2), "r_s mismatch"

    print("KERNEL_OK")
</pallas_src>

<mosaic_0001>
module attributes {stable_mosaic.version = 11 : i64} {
  func.func @prologue_ab_kernel(%arg0: i32, %arg1: memref<128x16xf32, #tpu.memory_space<vmem>>, %arg2: memref<128x32xf32, #tpu.memory_space<vmem>>, %arg3: memref<16x16xf32, #tpu.memory_space<vmem>>, %arg4: memref<16x8xf32, #tpu.memory_space<vmem>>, %arg5: memref<32x32xf32, #tpu.memory_space<vmem>>, %arg6: memref<1x32xf32, #tpu.memory_space<vmem>>, %arg7: memref<32x32xf32, #tpu.memory_space<vmem>>, %arg8: memref<1x32xf32, #tpu.memory_space<vmem>>, %arg9: memref<32x1xf32, #tpu.memory_space<vmem>>, %arg10: memref<32x1xf32, #tpu.memory_space<vmem>>, %arg11: memref<1x1xf32, #tpu.memory_space<vmem>>, %arg12: memref<16x32xf32, #tpu.memory_space<vmem>>, %arg13: memref<16x1xf32, #tpu.memory_space<vmem>>, %arg14: memref<16x32xf32, #tpu.memory_space<vmem>>, %arg15: memref<16x1xf32, #tpu.memory_space<vmem>>) attributes {dimension_semantics = [#tpu.dimension_semantics<arbitrary>], iteration_bounds = array<i64: 2>, scalar_prefetch = 0 : i64, scratch_operands = 2 : i64, tpu.core_type = #tpu.core_type<tc>, window_params = [{transform_indices = @transform_0, window_bounds = array<i64: 128, 16>}, {transform_indices = @transform_1, window_bounds = array<i64: 128, 32>}, {pipeline_mode = #tpu.pipeline_mode<synchronous>, transform_indices = @transform_2, window_bounds = array<i64: 16, 16>}, {pipeline_mode = #tpu.pipeline_mode<synchronous>, transform_indices = @transform_3, window_bounds = array<i64: 16, 8>}, {pipeline_mode = #tpu.pipeline_mode<synchronous>, transform_indices = @transform_4, window_bounds = array<i64: 32, 32>}, {pipeline_mode = #tpu.pipeline_mode<synchronous>, transform_indices = @transform_5, window_bounds = array<i64: 1, 32>}, {pipeline_mode = #tpu.pipeline_mode<synchronous>, transform_indices = @transform_6, window_bounds = array<i64: 32, 32>}, {pipeline_mode = #tpu.pipeline_mode<synchronous>, transform_indices = @transform_7, window_bounds = array<i64: 1, 32>}, {pipeline_mode = #tpu.pipeline_mode<synchronous>, transform_indices = @transform_8, window_bounds = array<i64: 32, 1>}, {pipeline_mode = #tpu.pipeline_mode<synchronous>, transform_indices = @transform_9, window_bounds = array<i64: 32, 1>}, {pipeline_mode = #tpu.pipeline_mode<synchronous>, transform_indices = @transform_10, window_bounds = array<i64: 1, 1>}, {pipeline_mode = #tpu.pipeline_mode<synchronous>, transform_indices = @transform_11, window_bounds = array<i64: 16, 32>}, {pipeline_mode = #tpu.pipeline_mode<synchronous>, transform_indices = @transform_12, window_bounds = array<i64: 16, 1>}]} {
    %c0_i32 = arith.constant 0 : i32
    %0 = arith.cmpi eq, %arg0, %c0_i32 : i32
    %1 = arith.extui %0 : i1 to i32
    %c0_i32_0 = arith.constant 0 : i32
    %2 = arith.cmpi ne, %1, %c0_i32_0 : i32
    scf.if %2 {
      %cst_15 = arith.constant 0.000000e+00 : f32
      %17 = vector.broadcast %cst_15 : f32 to vector<16x32xf32>
      %c0_16 = arith.constant 0 : index
      %c0_17 = arith.constant 0 : index
      %18 = vector.load %arg14[%c0_16, %c0_17] : memref<16x32xf32, #tpu.memory_space<vmem>>, vector<16x32xf32>
      tpu.vector_store %arg14[%c0_16, %c0_17], %17 {strides = array<i32>} : memref<16x32xf32, #tpu.memory_space<vmem>>, vector<16x32xf32>,
      %cst_18 = arith.constant 0.000000e+00 : f32
      %19 = vector.broadcast %cst_18 : f32 to vector<16x1xf32>
      %c0_19 = arith.constant 0 : index
      %c0_20 = arith.constant 0 : index
      %20 = vector.load %arg15[%c0_19, %c0_20] : memref<16x1xf32, #tpu.memory_space<vmem>>, vector<16x1xf32>
      tpu.vector_store %arg15[%c0_19, %c0_20], %19 {strides = array<i32>} : memref<16x1xf32, #tpu.memory_space<vmem>>, vector<16x1xf32>,
    } else {
    }
    %c0 = arith.constant 0 : index
    %c0_1 = arith.constant 0 : index
    %3 = vector.load %arg1[%c0, %c0_1] : memref<128x16xf32, #tpu.memory_space<vmem>>, vector<128x16xf32>
    %c0_2 = arith.constant 0 : index
    %c0_3 = arith.constant 0 : index
    %4 = vector.load %arg14[%c0_2, %c0_3] : memref<16x32xf32, #tpu.memory_space<vmem>>, vector<16x32xf32>
    %c0_4 = arith.constant 0 : index
    %c0_5 = arith.constant 0 : index
    %5 = vector.load %arg2[%c0_4, %c0_5] : memref<128x32xf32, #tpu.memory_space<vmem>>, vector<128x32xf32>
    %cst = arith.constant dense<0.000000e+00> : vector<16x32xf32>
    %6 = tpu.matmul %3, %5, %cst {dimension_numbers = #tpu.dot_dimension_numbers<[0], [0], [1], [1], [0, 1, 1, 1], [], []>} : vector<128x16xf32>, vector<128x32xf32>, vector<16x32xf32> -> vector<16x32xf32>
    %7 = arith.addf %4, %6 : vector<16x32xf32>
    %c0_6 = arith.constant 0 : index
    %c0_7 = arith.constant 0 : index
    %8 = vector.load %arg14[%c0_6, %c0_7] : memref<16x32xf32, #tpu.memory_space<vmem>>, vector<16x32xf32>
    tpu.vector_store %arg14[%c0_6, %c0_7], %7 {strides = array<i32>} : memref<16x32xf32, #tpu.memory_space<vmem>>, vector<16x32xf32>,
    %c0_8 = arith.constant 0 : index
    %c0_9 = arith.constant 0 : index
    %9 = vector.load %arg15[%c0_8, %c0_9] : memref<16x1xf32, #tpu.memory_space<vmem>>, vector<16x1xf32>
    %cst_10 = arith.constant 1.000000e+00 : f32
    %10 = vector.broadcast %cst_10 : f32 to vector<128x1xf32>
    %cst_11 = arith.constant dense<0.000000e+00> : vector<16x1xf32>
    %11 = tpu.matmul %3, %10, %cst_11 {dimension_numbers = #tpu.dot_dimension_numbers<[0], [0], [1], [1], [0, 1, 1, 1], [], []>} : vector<128x16xf32>, vector<128x1xf32>, vector<16x1xf32> -> vector<16x1xf32>
    %12 = arith.addf %9, %11 : vector<16x1xf32>
    %c0_12 = arith.constant 0 : index
    %c0_13 = arith.constant 0 : index
    %13 = vector.load %arg15[%c0_12, %c0_13] : memref<16x1xf32, #tpu.memory_space<vmem>>, vector<16x1xf32>
    tpu.vector_store %arg15[%c0_12, %c0_13], %12 {strides = array<i32>} : memref<16x1xf32, #tpu.memory_space<vmem>>, vector<16x1xf32>,
    %c1_i32 = arith.constant 1 : i32
    %14 = arith.cmpi eq, %arg0, %c1_i32 : i32
    %15 = arith.extui %14 : i1 to i32
    %c0_i32_14 = arith.constant 0 : i32
    %16 = arith.cmpi ne, %15, %c0_i32_14 : i32
    scf.if %16 {
      %c0_15 = arith.constant 0 : index
      %c0_16 = arith.constant 0 : index
      %17 = vector.load %arg15[%c0_15, %c0_16] : memref<16x1xf32, #tpu.memory_space<vmem>>, vector<16x1xf32>
      %cst_17 = arith.constant 1.000000e+00 : f32
      %18 = vector.broadcast %cst_17 : f32 to vector<16x1xf32>
      %19 = arith.subf %17, %18 : vector<16x1xf32>
      %cst_18 = arith.constant 0.000000e+00 : f32
      %20 = vector.broadcast %cst_18 : f32 to vector<16x1xf32>
      %21 = arith.maximumf %19, %20 : vector<16x1xf32>
      %cst_19 = arith.constant 1.000000e+00 : f32
      %22 = vector.broadcast %cst_19 : f32 to vector<16x1xf32>
      %23 = arith.addf %21, %22 : vector<16x1xf32>
      %cst_20 = arith.constant 1.000000e+00 : f32
      %24 = vector.broadcast %cst_20 : f32 to vector<16x1xf32>
      %25 = arith.divf %24, %23 : vector<16x1xf32>
      %c0_21 = arith.constant 0 : index
      %c0_22 = arith.constant 0 : index
      %26 = vector.load %arg14[%c0_21, %c0_22] : memref<16x32xf32, #tpu.memory_space<vmem>>, vector<16x32xf32>
      %27 = vector.broadcast %25 : vector<16x1xf32> to vector<16x32xf32>
      %28 = arith.mulf %27, %26 : vector<16x32xf32>
      %c0_23 = arith.constant 0 : index
      %c0_24 = arith.constant 0 : index
      %29 = vector.load %arg4[%c0_23, %c0_24] : memref<16x8xf32, #tpu.memory_space<vmem>>, vector<16x8xf32>
      %cst_25 = arith.constant dense<0.000000e+00> : vector<8xf32>
      %30 = vector.multi_reduction <add>, %29, %cst_25 [0] : vector<16x8xf32> to vector<8xf32>
      %31 = vector.shape_cast %30 : vector<8xf32> to vector<1x8xf32>
      %cst_26 = arith.constant 1.000000e+00 : f32
      %32 = vector.broadcast %cst_26 : f32 to vector<1x8xf32>
      %33 = arith.subf %31, %32 : vector<1x8xf32>
      %cst_27 = arith.constant 0.000000e+00 : f32
      %34 = vector.broadcast %cst_27 : f32 to vector<1x8xf32>
      %35 = arith.maximumf %33, %34 : vector<1x8xf32>
      %cst_28 = arith.constant 1.000000e+00 : f32
      %36 = vector.broadcast %cst_28 : f32 to vector<1x8xf32>
      %37 = arith.addf %35, %36 : vector<1x8xf32>
      %38 = vector.broadcast %37 : vector<1x8xf32> to vector<16x8xf32>
      %39 = arith.divf %29, %38 : vector<16x8xf32>
      %cst_29 = arith.constant dense<0.000000e+00> : vector<8x32xf32>
      %40 = tpu.matmul %39, %28, %cst_29 {dimension_numbers = #tpu.dot_dimension_numbers<[0], [0], [1], [1], [0, 1, 1, 1], [], []>} : vector<16x8xf32>, vector<16x32xf32>, vector<8x32xf32> -> vector<8x32xf32>
      %cst_30 = arith.constant dense<0.000000e+00> : vector<8x8xf32>
      %41 = tpu.matmul %40, %40, %cst_30 {dimension_numbers = #tpu.dot_dimension_numbers<[1], [1], [0], [0], [0, 0, 1, 0], [], []>} : vector<8x32xf32>, vector<8x32xf32>, vector<8x8xf32> -> vector<8x8xf32>
      %42 = arith.negf %41 : vector<8x8xf32>
      %43 = math.exp %42 : vector<8x8xf32>
      %cst_31 = arith.constant 1.000000e+00 : f32
      %44 = vector.broadcast %cst_31 : f32 to vector<8x8xf32>
      %45 = arith.addf %44, %43 : vector<8x8xf32>
      %46 = arith.divf %44, %45 : vector<8x8xf32>
      %47 = tpu.iota {dimensions = array<i32: 0>} : vector<8x8xi32>
      %48 = tpu.iota {dimensions = array<i32: 1>} : vector<8x8xi32>
      %49 = arith.cmpi eq, %47, %48 : vector<8x8xi32>
      %50 = arith.extui %49 : vector<8x8xi1> to vector<8x8xi32>
      %51 = arith.sitofp %50 : vector<8x8xi32> to vector<8x8xf32>
      %cst_32 = arith.constant 2.000000e+00 : f32
      %52 = vector.broadcast %cst_32 : f32 to vector<8x8xf32>
      %53 = arith.mulf %52, %51 : vector<8x8xf32>
      %54 = arith.addf %46, %53 : vector<8x8xf32>
      %c0_33 = arith.constant 0 : index
      %c0_34 = arith.constant 0 : index
      %55 = vector.load %arg5[%c0_33, %c0_34] : memref<32x32xf32, #tpu.memory_space<vmem>>, vector<32x32xf32>
      %c0_35 = arith.constant 0 : index
      %c0_36 = arith.constant 0 : index
      %56 = vector.load %arg6[%c0_35, %c0_36] : memref<1x32xf32, #tpu.memory_space<vmem>>, vector<1x32xf32>
      %57 = math.absf %54 : vector<8x8xf32>
      %cst_37 = arith.constant dense<0.000000e+00> : vector<8xf32>
      %58 = vector.multi_reduction <add>, %57, %cst_37 [1] : vector<8x8xf32> to vector<8xf32>
      %59 = vector.shape_cast %58 : vector<8xf32> to vector<8x1xf32>
      %60 = math.rsqrt %59 : vector<8x1xf32>
      %cst_38 = arith.constant dense<0.000000e+00> : vector<8x32xf32>
      %61 = tpu.matmul %40, %55, %cst_38 {dimension_numbers = #tpu.dot_dimension_numbers<[1], [0], [0], [1], [0, 0, 1, 1], [], []>} : vector<8x32xf32>, vector<32x32xf32>, vector<8x32xf32> -> vector<8x32xf32>
      %62 = vector.broadcast %60 : vector<8x1xf32> to vector<8x32xf32>
      %63 = arith.mulf %62, %61 : vector<8x32xf32>
      %cst_39 = arith.constant dense<0.000000e+00> : vector<8x32xf32>
      %64 = tpu.matmul %54, %63, %cst_39 {dimension_numbers = #tpu.dot_dimension_numbers<[1], [0], [0], [1], [0, 0, 1, 1], [], []>} : vector<8x8xf32>, vector<8x32xf32>, vector<8x32xf32> -> vector<8x32xf32>
      %65 = vector.broadcast %60 : vector<8x1xf32> to vector<8x32xf32>
      %66 = arith.mulf %65, %64 : vector<8x32xf32>
      %67 = vector.broadcast %56 : vector<1x32xf32> to vector<8x32xf32>
      %68 = arith.addf %66, %67 : vector<8x32xf32>
      %cst_40 = arith.constant dense<0.000000e+00> : vector<16xf32>
      %69 = vector.multi_reduction <add>, %39, %cst_40 [1] : vector<16x8xf32> to vector<16xf32>
      %70 = vector.shape_cast %69 : vector<16xf32> to vector<16x1xf32>
      %cst_41 = arith.constant 1.000000e+00 : f32
      %71 = vector.broadcast %cst_41 : f32 to vector<16x1xf32>
      %72 = arith.subf %70, %71 : vector<16x1xf32>
      %cst_42 = arith.constant 0.000000e+00 : f32
      %73 = vector.broadcast %cst_42 : f32 to vector<16x1xf32>
      %74 = arith.maximumf %72, %73 : vector<16x1xf32>
      %cst_43 = arith.constant 1.000000e+00 : f32
      %75 = vector.broadcast %cst_43 : f32 to vector<16x1xf32>
      %76 = arith.addf %74, %75 : vector<16x1xf32>
      %cst_44 = arith.constant dense<0.000000e+00> : vector<16x32xf32>
      %77 = tpu.matmul %29, %68, %cst_44 {dimension_numbers = #tpu.dot_dimension_numbers<[1], [0], [0], [1], [0, 0, 1, 1], [], []>} : vector<16x8xf32>, vector<8x32xf32>, vector<16x32xf32> -> vector<16x32xf32>
      %78 = vector.broadcast %76 : vector<16x1xf32> to vector<16x32xf32>
      %79 = arith.divf %77, %78 : vector<16x32xf32>
      %c0_45 = arith.constant 0 : index
      %c0_46 = arith.constant 0 : index
      %80 = vector.load %arg9[%c0_45, %c0_46] : memref<32x1xf32, #tpu.memory_space<vmem>>, vector<32x1xf32>
      %cst_47 = arith.constant dense<0.000000e+00> : vector<16x1xf32>
      %81 = tpu.matmul %28, %80, %cst_47 {dimension_numbers = #tpu.dot_dimension_numbers<[1], [0], [0], [1], [0, 0, 1, 1], [], []>} : vector<16x32xf32>, vector<32x1xf32>, vector<16x1xf32> -> vector<16x1xf32>
      %c0_48 = arith.constant 0 : index
      %c0_49 = arith.constant 0 : index
      %82 = vector.load %arg10[%c0_48, %c0_49] : memref<32x1xf32, #tpu.memory_space<vmem>>, vector<32x1xf32>
      %cst_50 = arith.constant dense<0.000000e+00> : vector<16x1xf32>
      %83 = tpu.matmul %79, %82, %cst_50 {dimension_numbers = #tpu.dot_dimension_numbers<[1], [0], [0], [1], [0, 0, 1, 1], [], []>} : vector<16x32xf32>, vector<32x1xf32>, vector<16x1xf32> -> vector<16x1xf32>
      %84 = arith.addf %81, %83 : vector<16x1xf32>
      %c0_51 = arith.constant 0 : index
      %c0_52 = arith.constant 0 : index
      %85 = vector.load %arg11[%c0_51, %c0_52] : memref<1x1xf32, #tpu.memory_space<vmem>>, vector<1x1xf32>
      %86 = vector.broadcast %85 : vector<1x1xf32> to vector<16x1xf32>
      %87 = arith.addf %84, %86 : vector<16x1xf32>
      %88 = arith.negf %87 : vector<16x1xf32>
      %89 = math.exp %88 : vector<16x1xf32>
      %cst_53 = arith.constant 1.000000e+00 : f32
      %90 = vector.broadcast %cst_53 : f32 to vector<16x1xf32>
      %91 = arith.addf %90, %89 : vector<16x1xf32>
      %92 = arith.divf %90, %91 : vector<16x1xf32>
      %c0_54 = arith.constant 0 : index
      %c0_55 = arith.constant 0 : index
      %93 = vector.load %arg13[%c0_54, %c0_55] : memref<16x1xf32, #tpu.memory_space<vmem>>, vector<16x1xf32>
      tpu.vector_store %arg13[%c0_54, %c0_55], %92 {strides = array<i32>} : memref<16x1xf32, #tpu.memory_space<vmem>>, vector<16x1xf32>,
      %cst_56 = arith.constant 1.500000e-01 : f32
      %94 = vector.broadcast %cst_56 : f32 to vector<16x32xf32>
      %95 = arith.mulf %94, %79 : vector<16x32xf32>
      %96 = arith.addf %28, %95 : vector<16x32xf32>
      %97 = tpu.iota {dimensions = array<i32: 0>} : vector<16x16xi32>
      %98 = tpu.iota {dimensions = array<i32: 1>} : vector<16x16xi32>
      %99 = arith.cmpi eq, %97, %98 : vector<16x16xi32>
      %100 = arith.extui %99 : vector<16x16xi1> to vector<16x16xi32>
      %101 = arith.sitofp %100 : vector<16x16xi32> to vector<16x16xf32>
      %c0_57 = arith.constant 0 : index
      %c0_58 = arith.constant 0 : index
      %102 = vector.load %arg3[%c0_57, %c0_58] : memref<16x16xf32, #tpu.memory_space<vmem>>, vector<16x16xf32>
      %cst_59 = arith.constant 1.000000e+04 : f32
      %103 = vector.broadcast %cst_59 : f32 to vector<16x16xf32>
      %104 = arith.mulf %101, %103 : vector<16x16xf32>
      %105 = arith.subf %102, %104 : vector<16x16xf32>
      %cst_60 = arith.constant 0.000000e+00 : f32
      %106 = vector.broadcast %cst_60 : f32 to vector<16x16xf32>
      %107 = arith.maximumf %105, %106 : vector<16x16xf32>
      %cst_61 = arith.constant 2.000000e+00 : f32
      %108 = vector.broadcast %cst_61 : f32 to vector<16x16xf32>
      %109 = arith.mulf %108, %101 : vector<16x16xf32>
      %110 = arith.addf %107, %109 : vector<16x16xf32>
      %c0_62 = arith.constant 0 : index
      %c0_63 = arith.constant 0 : index
      %111 = vector.load %arg7[%c0_62, %c0_63] : memref<32x32xf32, #tpu.memory_space<vmem>>, vector<32x32xf32>
      %c0_64 = arith.constant 0 : index
      %c0_65 = arith.constant 0 : index
      %112 = vector.load %arg8[%c0_64, %c0_65] : memref<1x32xf32, #tpu.memory_space<vmem>>, vector<1x32xf32>
      %113 = math.absf %110 : vector<16x16xf32>
      %cst_66 = arith.constant dense<0.000000e+00> : vector<16xf32>
      %114 = vector.multi_reduction <add>, %113, %cst_66 [1] : vector<16x16xf32> to vector<16xf32>
      %115 = vector.shape_cast %114 : vector<16xf32> to vector<16x1xf32>
      %116 = math.rsqrt %115 : vector<16x1xf32>
      %cst_67 = arith.constant dense<0.000000e+00> : vector<16x32xf32>
      %117 = tpu.matmul %96, %111, %cst_67 {dimension_numbers = #tpu.dot_dimension_numbers<[1], [0], [0], [1], [0, 0, 1, 1], [], []>} : vector<16x32xf32>, vector<32x32xf32>, vector<16x32xf32> -> vector<16x32xf32>
      %118 = vector.broadcast %116 : vector<16x1xf32> to vector<16x32xf32>
      %119 = arith.mulf %118, %117 : vector<16x32xf32>
      %cst_68 = arith.constant dense<0.000000e+00> : vector<16x32xf32>
      %120 = tpu.matmul %110, %119, %cst_68 {dimension_numbers = #tpu.dot_dimension_numbers<[1], [0], [0], [1], [0, 0, 1, 1], [], []>} : vector<16x16xf32>, vector<16x32xf32>, vector<16x32xf32> -> vector<16x32xf32>
      %121 = vector.broadcast %116 : vector<16x1xf32> to vector<16x32xf32>
      %122 = arith.mulf %121, %120 : vector<16x32xf32>
      %123 = vector.broadcast %112 : vector<1x32xf32> to vector<16x32xf32>
      %124 = arith.addf %122, %123 : vector<16x32xf32>
      %c0_69 = arith.constant 0 : index
      %c0_70 = arith.constant 0 : index
      %125 = vector.load %arg12[%c0_69, %c0_70] : memref<16x32xf32, #tpu.memory_space<vmem>>, vector<16x32xf32>
      tpu.vector_store %arg12[%c0_69, %c0_70], %124 {strides = array<i32>} : memref<16x32xf32, #tpu.memory_space<vmem>>, vector<16x32xf32>,
    } else {
    }
    return
  }
  func.func @transform_0(%arg0: i32) -> (i32, i32) {
    %c0_i32 = arith.constant 0 : i32
    %c0_i32_0 = arith.constant 0 : i32
    return %arg0, %c0_i32 : i32, i32
  }
  func.func @transform_1(%arg0: i32) -> (i32, i32) {
    %c0_i32 = arith.constant 0 : i32
    %c0_i32_0 = arith.constant 0 : i32
    return %arg0, %c0_i32 : i32, i32
  }
  func.func @transform_2(%arg0: i32) -> (i32, i32) {
    %c0_i32 = arith.constant 0 : i32
    %c0_i32_0 = arith.constant 0 : i32
    %c0_i32_1 = arith.constant 0 : i32
    return %c0_i32, %c0_i32_0 : i32, i32
  }
  func.func @transform_3(%arg0: i32) -> (i32, i32) {
    %c0_i32 = arith.constant 0 : i32
    %c0_i32_0 = arith.constant 0 : i32
    %c0_i32_1 = arith.constant 0 : i32
    return %c0_i32, %c0_i32_0 : i32, i32
  }
  func.func @transform_4(%arg0: i32) -> (i32, i32) {
    %c0_i32 = arith.constant 0 : i32
    %c0_i32_0 = arith.constant 0 : i32
    %c0_i32_1 = arith.constant 0 : i32
    return %c0_i32, %c0_i32_0 : i32, i32
  }
  func.func @transform_5(%arg0: i32) -> (i32, i32) {
    %c0_i32 = arith.constant 0 : i32
    %c0_i32_0 = arith.constant 0 : i32
    %c0_i32_1 = arith.constant 0 : i32
    return %c0_i32, %c0_i32_0 : i32, i32
  }
  func.func @transform_6(%arg0: i32) -> (i32, i32) {
    %c0_i32 = arith.constant 0 : i32
    %c0_i32_0 = arith.constant 0 : i32
    %c0_i32_1 = arith.constant 0 : i32
    return %c0_i32, %c0_i32_0 : i32, i32
  }
  func.func @transform_7(%arg0: i32) -> (i32, i32) {
    %c0_i32 = arith.constant 0 : i32
    %c0_i32_0 = arith.constant 0 : i32
    %c0_i32_1 = arith.constant 0 : i32
    return %c0_i32, %c0_i32_0 : i32, i32
  }
  func.func @transform_8(%arg0: i32) -> (i32, i32) {
    %c0_i32 = arith.constant 0 : i32
    %c0_i32_0 = arith.constant 0 : i32
    %c0_i32_1 = arith.constant 0 : i32
    return %c0_i32, %c0_i32_0 : i32, i32
  }
  func.func @transform_9(%arg0: i32) -> (i32, i32) {
    %c0_i32 = arith.constant 0 : i32
    %c0_i32_0 = arith.constant 0 : i32
    %c0_i32_1 = arith.constant 0 : i32
    return %c0_i32, %c0_i32_0 : i32, i32
  }
  func.func @transform_10(%arg0: i32) -> (i32, i32) {
    %c0_i32 = arith.constant 0 : i32
    %c0_i32_0 = arith.constant 0 : i32
    %c0_i32_1 = arith.constant 0 : i32
    return %c0_i32, %c0_i32_0 : i32, i32
  }
  func.func @transform_11(%arg0: i32) -> (i32, i32) {
    %c0_i32 = arith.constant 0 : i32
    %c0_i32_0 = arith.constant 0 : i32
    %c0_i32_1 = arith.constant 0 : i32
    return %c0_i32, %c0_i32_0 : i32, i32
  }
  func.func @transform_12(%arg0: i32) -> (i32, i32) {
    %c0_i32 = arith.constant 0 : i32
    %c0_i32_0 = arith.constant 0 : i32
    %c0_i32_1 = arith.constant 0 : i32
    return %c0_i32, %c0_i32_0 : i32, i32
  }
}

</mosaic_0001>

<llo_original>
// kernel: tpu_custom_call.1
$region0: #{tpu_custom_call.1}
  #allocation0 [shape = 'u32[]', space=smem, size = 0x4, offset = 0x4, fixed_abs, tag = 'smem constant byte address 0x4 - core index']
  #allocation1 [shape = 'u32[144,128]{1,0:T(1,128)}', space=vmem, size = 0x12000, scoped, tag = 'internal scratch']
  #allocation2 [shape = 'f32[16,32]{1,0:T(8,128)}', space=vmem, size = 0x2000, scoped, tag = 'scratch operand']
  #allocation3 [shape = 'f32[16,1]{1,0:T(8,128)}', space=vmem, size = 0x2000, scoped, tag = 'scratch operand']
  #allocation4 [shape = 'f32[1,1]{1,0:T(1,128)S(1)}', space=vmem, size = 0x200, scoped, tag = 'scoped memory for tpu_custom_call.1']
  %s0 = inlined_call_operand.vmem [shape: f32[256,16], index: 0, kind: input, shape index: {}]
  %s1 = inlined_call_operand.vmem [shape: f32[256,32], index: 1, kind: input, shape index: {}]
  %s2 = inlined_call_operand.vmem [shape: f32[16,16], index: 2, kind: input, shape index: {}]
  %s3 = inlined_call_operand.vmem [shape: f32[16,8], index: 3, kind: input, shape index: {}]
  %s4 = inlined_call_operand.vmem [shape: f32[32,32], index: 4, kind: input, shape index: {}]
  %s5 = inlined_call_operand.vmem [shape: f32[1,32], index: 5, kind: input, shape index: {}]
  %s6 = inlined_call_operand.vmem [shape: f32[32,32], index: 6, kind: input, shape index: {}]
  %s7 = inlined_call_operand.vmem [shape: f32[1,32], index: 7, kind: input, shape index: {}]
  %s8 = inlined_call_operand.vmem [shape: f32[32,1], index: 8, kind: input, shape index: {}]
  %s9 = inlined_call_operand.vmem [shape: f32[32,1], index: 9, kind: input, shape index: {}]
  %s10 = inlined_call_operand.<no memory space> [shape: f32[1,1], index: 10, kind: input, shape index: {}]
  %s11 = inlined_call_operand.hbm [shape: f32[16,32], index: 11, kind: output, shape index: {0}]
  %s12 = inlined_call_operand.vmem [shape: f32[16,1], index: 12, kind: output, shape index: {1}]
  %13 = xla_tuple %s11, %s12
  %s14 = sld [smem:[#allocation0]]
  $region93: #{tpu_custom_call.1} parent=0
    _
  %s16 = ssub.s32 1, %s14
  %s17 = scalar_select 0, %s16, %s14
  %v18 = vstv %s10
  %19 = vst [vmem:[#allocation4] sm:$0x1] %v18
  $region1: #{tpu_custom_call.1} parent=0
    #allocation5 [shape = 'u8[8192]{0}', space=vmem, size = 0x2000, scoped, tag = 'output window, operand 0, single buffered']
    #allocation6 [shape = 's32[2]{0}', space=sflag, size = 0x8, scoped, tag = 'scoped memory for tpu_custom_call.1']
    %20 = vsyncpa [#allocation6], 0
    loop: start=0, step=1, limit=4
    $region2: #{tpu_custom_call.1} parent=1 // loop_pre_header
      _
    $region3: #{tpu_custom_call.1} parent=1 // loop_header
      %s22 = sphi 0, %s26
      %p23 = scmp.ge.s32.totalorder %s22, 4
      %s32 = sphi 0, %s34
      %s35 = sphi 0, %s32
      %s36 = sphi 0, %s35
      %s52 = sphi 0, %s36
      %s58 = sphi 0, %s60
      %s61 = sphi 0, %s58
      %s62 = sphi 0, %s61
      %s78 = sphi 0, %s62
      %s82 = sphi 0, %s82
      %s84 = sphi 0, %s82
      %s85 = sphi 0, %s84
      %s99 = sphi 0, %s85
      %s103 = sphi 0, %s103
      %s105 = sphi 0, %s103
      %s106 = sphi 0, %s105
      %s120 = sphi 0, %s106
      %s124 = sphi 0, %s124
      %s126 = sphi 0, %s124
      %s127 = sphi 0, %s126
      %s141 = sphi 0, %s127
      %s145 = sphi 0, %s145
      %s147 = sphi 0, %s145
      %s148 = sphi 0, %s147
      %s162 = sphi 0, %s148
      %s166 = sphi 0, %s166
      %s168 = sphi 0, %s166
      %s169 = sphi 0, %s168
      %s183 = sphi 0, %s169
      %s187 = sphi 0, %s187
      %s189 = sphi 0, %s187
      %s190 = sphi 0, %s189
      %s204 = sphi 0, %s190
      %s208 = sphi 0, %s208
      %s210 = sphi 0, %s208
      %s211 = sphi 0, %s210
      %s225 = sphi 0, %s211
      %s229 = sphi 0, %s229
      %s231 = sphi 0, %s229
      %s232 = sphi 0, %s231
      %s246 = sphi 0, %s232
      %s250 = sphi 0, %s250
      %s252 = sphi 0, %s250
      %s253 = sphi 0, %s252
      %s267 = sphi 0, %s253
      %s271 = sphi 0, %s271
      %s273 = sphi 0, %s271
      %s274 = sphi 0, %s273
      %s288 = sphi 0, %s274
      %s292 = sphi 0, %s292
      %s294 = sphi 0, %s292
      %s295 = sphi 0, %s294
      %s309 = sphi 0, %s295
    $region4: #{tpu_custom_call.1} parent=1 // loop_header_branch
      %25 = sbr.rel (%p23) target = $region8
    $region5: #{tpu_custom_call.1} parent=1 // loop_body
      %s27 = ssub.s32 %s22, 1
      %s28 = ssub.s32 %s22, 2
      %s29 = sadd.s32 %s22, 1
      %s30 = ssub.s32 %s22, %s29
      %p31 = scmp.eq.s32.totalorder %s30, 0
      %s33 = sadd.s32 %s32, 1
      %s34 = scalar_select %p31, %s32, %s33
      %p37 = pneg %p31
      %p38 = scmp.eq.s32.totalorder %s22, 1
      %p39 = por %p37, %p38
      %p40 = scmp.ne.s32.totalorder %s32, %s35
      %p41 = scmp.eq.s32.totalorder %s22, 0
      %p42 = por %p40, %p41
      %p43 = scmp.ne.s32.totalorder %s32, %s35
      %p44 = scmp.eq.s32.totalorder %s27, 1
      %p45 = por %p43, %p44
      %p46 = scmp.ne.s32.totalorder %s35, %s36
      %p47 = scmp.eq.s32.totalorder %s27, 0
      %p48 = por %p46, %p47
      %p49 = scmp.ne.s32.totalorder %s35, %s36
      %p50 = scmp.eq.s32.totalorder %s28, 1
      %p51 = por %p49, %p50
      %p53 = scmp.ne.s32.totalorder %s36, %s52
      %p54 = scmp.eq.s32.totalorder %s28, 0
      %p55 = por %p53, %p54
      %s56 = ssub.s32 %s22, %s29
      %p57 = scmp.eq.s32.totalorder %s56, 0
      %s59 = sadd.s32 %s58, 1
      %s60 = scalar_select %p57, %s58, %s59
      %p63 = pneg %p57
      %p64 = scmp.eq.s32.totalorder %s22, 1
      %p65 = por %p63, %p64
      %p66 = scmp.ne.s32.totalorder %s58, %s61
      %p67 = scmp.eq.s32.totalorder %s22, 0
      %p68 = por %p66, %p67
      %p69 = scmp.ne.s32.totalorder %s58, %s61
      %p70 = scmp.eq.s32.totalorder %s27, 1
      %p71 = por %p69, %p70
      %p72 = scmp.ne.s32.totalorder %s61, %s62
      %p73 = scmp.eq.s32.totalorder %s27, 0
      %p74 = por %p72, %p73
      %p75 = scmp.ne.s32.totalorder %s61, %s62
      %p76 = scmp.eq.s32.totalorder %s28, 1
      %p77 = por %p75, %p76
      %p79 = scmp.ne.s32.totalorder %s62, %s78
      %p80 = scmp.eq.s32.totalorder %s28, 0
      %p81 = por %p79, %p80
      %s83 = sadd.s32 %s82, 1
      %p86 = scmp.eq.s32.totalorder %s22, 1
      %p87 = scmp.ne.s32.totalorder %s82, %s84
      %p88 = scmp.eq.s32.totalorder %s22, 0
      %p89 = por %p87, %p88
      %p90 = scmp.ne.s32.totalorder %s82, %s84
      %p91 = scmp.eq.s32.totalorder %s27, 1
      %p92 = por %p90, %p91
      %p93 = scmp.ne.s32.totalorder %s84, %s85
      %p94 = scmp.eq.s32.totalorder %s27, 0
      %p95 = por %p93, %p94
      %p96 = scmp.ne.s32.totalorder %s84, %s85
      %p97 = scmp.eq.s32.totalorder %s28, 1
      %p98 = por %p96, %p97
      %p100 = scmp.ne.s32.totalorder %s85, %s99
      %p101 = scmp.eq.s32.totalorder %s28, 0
      %p102 = por %p100, %p101
      %s104 = sadd.s32 %s103, 1
      %p107 = scmp.eq.s32.totalorder %s22, 1
      %p108 = scmp.ne.s32.totalorder %s103, %s105
      %p109 = scmp.eq.s32.totalorder %s22, 0
      %p110 = por %p108, %p109
      %p111 = scmp.ne.s32.totalorder %s103, %s105
      %p112 = scmp.eq.s32.totalorder %s27, 1
      %p113 = por %p111, %p112
      %p114 = scmp.ne.s32.totalorder %s105, %s106
      %p115 = scmp.eq.s32.totalorder %s27, 0
      %p116 = por %p114, %p115
      %p117 = scmp.ne.s32.totalorder %s105, %s106
      %p118 = scmp.eq.s32.totalorder %s28, 1
      %p119 = por %p117, %p118
      %p121 = scmp.ne.s32.totalorder %s106, %s120
      %p122 = scmp.eq.s32.totalorder %s28, 0
      %p123 = por %p121, %p122
      %s125 = sadd.s32 %s124, 1
      %p128 = scmp.eq.s32.totalorder %s22, 1
      %p129 = scmp.ne.s32.totalorder %s124, %s126
      %p130 = scmp.eq.s32.totalorder %s22, 0
      %p131 = por %p129, %p130
      %p132 = scmp.ne.s32.totalorder %s124, %s126
      %p133 = scmp.eq.s32.totalorder %s27, 1
      %p134 = por %p132, %p133
      %p135 = scmp.ne.s32.totalorder %s126, %s127
      %p136 = scmp.eq.s32.totalorder %s27, 0
      %p137 = por %p135, %p136
      %p138 = scmp.ne.s32.totalorder %s126, %s127
      %p139 = scmp.eq.s32.totalorder %s28, 1
      %p140 = por %p138, %p139
      %p142 = scmp.ne.s32.totalorder %s127, %s141
      %p143 = scmp.eq.s32.totalorder %s28, 0
      %p144 = por %p142, %p143
      %s146 = sadd.s32 %s145, 1
      %p149 = scmp.eq.s32.totalorder %s22, 1
      %p150 = scmp.ne.s32.totalorder %s145, %s147
      %p151 = scmp.eq.s32.totalorder %s22, 0
      %p152 = por %p150, %p151
      %p153 = scmp.ne.s32.totalorder %s145, %s147
      %p154 = scmp.eq.s32.totalorder %s27, 1
      %p155 = por %p153, %p154
      %p156 = scmp.ne.s32.totalorder %s147, %s148
      %p157 = scmp.eq.s32.totalorder %s27, 0
      %p158 = por %p156, %p157
      %p159 = scmp.ne.s32.totalorder %s147, %s148
      %p160 = scmp.eq.s32.totalorder %s28, 1
      %p161 = por %p159, %p160
      %p163 = scmp.ne.s32.totalorder %s148, %s162
      %p164 = scmp.eq.s32.totalorder %s28, 0
      %p165 = por %p163, %p164
      %s167 = sadd.s32 %s166, 1
      %p170 = scmp.eq.s32.totalorder %s22, 1
      %p171 = scmp.ne.s32.totalorder %s166, %s168
      %p172 = scmp.eq.s32.totalorder %s22, 0
      %p173 = por %p171, %p172
      %p174 = scmp.ne.s32.totalorder %s166, %s168
      %p175 = scmp.eq.s32.totalorder %s27, 1
      %p176 = por %p174, %p175
      %p177 = scmp.ne.s32.totalorder %s168, %s169
      %p178 = scmp.eq.s32.totalorder %s27, 0
      %p179 = por %p177, %p178
      %p180 = scmp.ne.s32.totalorder %s168, %s169
      %p181 = scmp.eq.s32.totalorder %s28, 1
      %p182 = por %p180, %p181
      %p184 = scmp.ne.s32.totalorder %s169, %s183
      %p185 = scmp.eq.s32.totalorder %s28, 0
      %p186 = por %p184, %p185
      %s188 = sadd.s32 %s187, 1
      %p191 = scmp.eq.s32.totalorder %s22, 1
      %p192 = scmp.ne.s32.totalorder %s187, %s189
      %p193 = scmp.eq.s32.totalorder %s22, 0
      %p194 = por %p192, %p193
      %p195 = scmp.ne.s32.totalorder %s187, %s189
      %p196 = scmp.eq.s32.totalorder %s27, 1
      %p197 = por %p195, %p196
      %p198 = scmp.ne.s32.totalorder %s189, %s190
      %p199 = scmp.eq.s32.totalorder %s27, 0
      %p200 = por %p198, %p199
      %p201 = scmp.ne.s32.totalorder %s189, %s190
      %p202 = scmp.eq.s32.totalorder %s28, 1
      %p203 = por %p201, %p202
      %p205 = scmp.ne.s32.totalorder %s190, %s204
      %p206 = scmp.eq.s32.totalorder %s28, 0
      %p207 = por %p205, %p206
      %s209 = sadd.s32 %s208, 1
      %p212 = scmp.eq.s32.totalorder %s22, 1
      %p213 = scmp.ne.s32.totalorder %s208, %s210
      %p214 = scmp.eq.s32.totalorder %s22, 0
      %p215 = por %p213, %p214
      %p216 = scmp.ne.s32.totalorder %s208, %s210
      %p217 = scmp.eq.s32.totalorder %s27, 1
      %p218 = por %p216, %p217
      %p219 = scmp.ne.s32.totalorder %s210, %s211
      %p220 = scmp.eq.s32.totalorder %s27, 0
      %p221 = por %p219, %p220
      %p222 = scmp.ne.s32.totalorder %s210, %s211
      %p223 = scmp.eq.s32.totalorder %s28, 1
      %p224 = por %p222, %p223
      %p226 = scmp.ne.s32.totalorder %s211, %s225
      %p227 = scmp.eq.s32.totalorder %s28, 0
      %p228 = por %p226, %p227
      %s230 = sadd.s32 %s229, 1
      %p233 = scmp.eq.s32.totalorder %s22, 1
      %p234 = scmp.ne.s32.totalorder %s229, %s231
      %p235 = scmp.eq.s32.totalorder %s22, 0
      %p236 = por %p234, %p235
      %p237 = scmp.ne.s32.totalorder %s229, %s231
      %p238 = scmp.eq.s32.totalorder %s27, 1
      %p239 = por %p237, %p238
      %p240 = scmp.ne.s32.totalorder %s231, %s232
      %p241 = scmp.eq.s32.totalorder %s27, 0
      %p242 = por %p240, %p241
      %p243 = scmp.ne.s32.totalorder %s231, %s232
      %p244 = scmp.eq.s32.totalorder %s28, 1
      %p245 = por %p243, %p244
      %p247 = scmp.ne.s32.totalorder %s232, %s246
      %p248 = scmp.eq.s32.totalorder %s28, 0
      %p249 = por %p247, %p248
      %s251 = sadd.s32 %s250, 1
      %p254 = scmp.eq.s32.totalorder %s22, 1
      %p255 = scmp.ne.s32.totalorder %s250, %s252
      %p256 = scmp.eq.s32.totalorder %s22, 0
      %p257 = por %p255, %p256
      %p258 = scmp.ne.s32.totalorder %s250, %s252
      %p259 = scmp.eq.s32.totalorder %s27, 1
      %p260 = por %p258, %p259
      %p261 = scmp.ne.s32.totalorder %s252, %s253
      %p262 = scmp.eq.s32.totalorder %s27, 0
      %p263 = por %p261, %p262
      %p264 = scmp.ne.s32.totalorder %s252, %s253
      %p265 = scmp.eq.s32.totalorder %s28, 1
      %p266 = por %p264, %p265
      %p268 = scmp.ne.s32.totalorder %s253, %s267
      %p269 = scmp.eq.s32.totalorder %s28, 0
      %p270 = por %p268, %p269
      %s272 = sadd.s32 %s271, 1
      %p275 = scmp.eq.s32.totalorder %s22, 1
      %p276 = scmp.ne.s32.totalorder %s271, %s273
      %p277 = scmp.eq.s32.totalorder %s22, 0
      %p278 = por %p276, %p277
      %p279 = scmp.ne.s32.totalorder %s271, %s273
      %p280 = scmp.eq.s32.totalorder %s27, 1
      %p281 = por %p279, %p280
      %p282 = scmp.ne.s32.totalorder %s273, %s274
      %p283 = scmp.eq.s32.totalorder %s27, 0
      %p284 = por %p282, %p283
      %p285 = scmp.ne.s32.totalorder %s273, %s274
      %p286 = scmp.eq.s32.totalorder %s28, 1
      %p287 = por %p285, %p286
      %p289 = scmp.ne.s32.totalorder %s274, %s288
      %p290 = scmp.eq.s32.totalorder %s28, 0
      %p291 = por %p289, %p290
      %s293 = sadd.s32 %s292, 1
      %p296 = scmp.eq.s32.totalorder %s22, 1
      %p297 = scmp.ne.s32.totalorder %s292, %s294
      %p298 = scmp.eq.s32.totalorder %s22, 0
      %p299 = por %p297, %p298
      %p300 = scmp.ne.s32.totalorder %s292, %s294
      %p301 = scmp.eq.s32.totalorder %s27, 1
      %p302 = por %p300, %p301
      %p303 = scmp.ne.s32.totalorder %s294, %s295
      %p304 = scmp.eq.s32.totalorder %s27, 0
      %p305 = por %p303, %p304
      %p306 = scmp.ne.s32.totalorder %s294, %s295
      %p307 = scmp.eq.s32.totalorder %s28, 1
      %p308 = por %p306, %p307
      %p310 = scmp.ne.s32.totalorder %s295, %s309
      %p311 = scmp.eq.s32.totalorder %s28, 0
      %p312 = por %p310, %p311
      %p313 = scmp.le.s32.totalorder 1, %s22
      %p314 = scmp.lt.s32.totalorder %s22, 3
      %p315 = pnand %p313, %p314
      %p316 = pneg %p315
      // Predicated region
      $region9: #{tpu_custom_call.1} parent=5 // pred_check
        _
      $region10: #{tpu_custom_call.1} parent=5 // pred_check_branch
        %318 = sbr.rel (%p315) target = $region12
      $region11: #{tpu_custom_call.1} parent=5 // pred_region
        %s319 = ssub.s32 %s22, 1
        // Predicated region
        $region13: #{tpu_custom_call.1} parent=11 // pred_check
          %p320 = pneg %p95
        $region14: #{tpu_custom_call.1} parent=11 // pred_check_branch
          %322 = sbr.rel (%p320) target = $region16
        $region15: #{tpu_custom_call.1} parent=11 // pred_region
          _
        $region16: #{tpu_custom_call.1} parent=11 // pred_fallthru
          _
        // Predicated region
        $region17: #{tpu_custom_call.1} parent=11 // pred_check
          %p323 = pneg %p116
        $region18: #{tpu_custom_call.1} parent=11 // pred_check_branch
          %325 = sbr.rel (%p323) target = $region20
        $region19: #{tpu_custom_call.1} parent=11 // pred_region
          _
        $region20: #{tpu_custom_call.1} parent=11 // pred_fallthru
          _
        // Predicated region
        $region21: #{tpu_custom_call.1} parent=11 // pred_check
          %p326 = pneg %p137
        $region22: #{tpu_custom_call.1} parent=11 // pred_check_branch
          %328 = sbr.rel (%p326) target = $region24
        $region23: #{tpu_custom_call.1} parent=11 // pred_region
          _
        $region24: #{tpu_custom_call.1} parent=11 // pred_fallthru
          _
        // Predicated region
        $region25: #{tpu_custom_call.1} parent=11 // pred_check
          %p329 = pneg %p158
        $region26: #{tpu_custom_call.1} parent=11 // pred_check_branch
          %331 = sbr.rel (%p329) target = $region28
        $region27: #{tpu_custom_call.1} parent=11 // pred_region
          _
        $region28: #{tpu_custom_call.1} parent=11 // pred_fallthru
          _
        // Predicated region
        $region29: #{tpu_custom_call.1} parent=11 // pred_check
          %p332 = pneg %p179
        $region30: #{tpu_custom_call.1} parent=11 // pred_check_branch
          %334 = sbr.rel (%p332) target = $region32
        $region31: #{tpu_custom_call.1} parent=11 // pred_region
          _
        $region32: #{tpu_custom_call.1} parent=11 // pred_fallthru
          _
        // Predicated region
        $region33: #{tpu_custom_call.1} parent=11 // pred_check
          %p335 = pneg %p200
        $region34: #{tpu_custom_call.1} parent=11 // pred_check_branch
          %337 = sbr.rel (%p335) target = $region36
        $region35: #{tpu_custom_call.1} parent=11 // pred_region
          _
        $region36: #{tpu_custom_call.1} parent=11 // pred_fallthru
          _
        // Predicated region
        $region37: #{tpu_custom_call.1} parent=11 // pred_check
          %p338 = pneg %p221
        $region38: #{tpu_custom_call.1} parent=11 // pred_check_branch
          %340 = sbr.rel (%p338) target = $region40
        $region39: #{tpu_custom_call.1} parent=11 // pred_region
          _
        $region40: #{tpu_custom_call.1} parent=11 // pred_fallthru
          _
        // Predicated region
        $region41: #{tpu_custom_call.1} parent=11 // pred_check
          %p341 = pneg %p242
        $region42: #{tpu_custom_call.1} parent=11 // pred_check_branch
          %343 = sbr.rel (%p341) target = $region44
        $region43: #{tpu_custom_call.1} parent=11 // pred_region
          _
        $region44: #{tpu_custom_call.1} parent=11 // pred_fallthru
          _
        // Predicated region
        $region45: #{tpu_custom_call.1} parent=11 // pred_check
          %p344 = pneg %p263
        $region46: #{tpu_custom_call.1} parent=11 // pred_check_branch
          %346 = sbr.rel (%p344) target = $region48
        $region47: #{tpu_custom_call.1} parent=11 // pred_region
          _
        $region48: #{tpu_custom_call.1} parent=11 // pred_fallthru
          _
      $region12: #{tpu_custom_call.1} parent=5 // pred_fallthru
        _
      %p347 = scmp.lt.s32.totalorder %s22, 2
      // Predicated region
      $region49: #{tpu_custom_call.1} parent=5 // pred_check
        %p348 = pneg %p347
      $region50: #{tpu_custom_call.1} parent=5 // pred_check_branch
        %350 = sbr.rel (%p348) target = $region52
      $region51: #{tpu_custom_call.1} parent=5 // pred_region
        // Predicated region
        $region53: #{tpu_custom_call.1} parent=51 // pred_check
          %p351 = pneg %p42
        $region54: #{tpu_custom_call.1} parent=51 // pred_check_branch
          %353 = sbr.rel (%p351) target = $region56
        $region55: #{tpu_custom_call.1} parent=51 // pred_region
          %s354 = smul.u32 16, %s22
          %p355 = scmp.lt.s32.totalorder %s354, 31
          %s356 = scalar_select %p355, %s354, 31
          %s357 = smul.addr %s356, 8
          %s358 = scalar_lea.vmem %s0, %s357
          %s359 = smul.u32 16, %s22
        $region56: #{tpu_custom_call.1} parent=51 // pred_fallthru
          _
        // Predicated region
        $region57: #{tpu_custom_call.1} parent=51 // pred_check
          %p360 = pneg %p68
        $region58: #{tpu_custom_call.1} parent=51 // pred_check_branch
          %362 = sbr.rel (%p360) target = $region60
        $region59: #{tpu_custom_call.1} parent=51 // pred_region
          %s363 = smul.u32 16, %s22
          %p364 = scmp.lt.s32.totalorder %s363, 31
          %s365 = scalar_select %p364, %s363, 31
          %s366 = smul.addr %s365, 8
          %s367 = scalar_lea.vmem %s1, %s366
          %s368 = smul.u32 16, %s22
        $region60: #{tpu_custom_call.1} parent=51 // pred_fallthru
          _
      $region52: #{tpu_custom_call.1} parent=5 // pred_fallthru
        _
      %p369 = scmp.le.s32.totalorder 1, %s22
      %p370 = scmp.lt.s32.totalorder %s22, 3
      %p371 = pnand %p369, %p370
      %p372 = pneg %p371
      // Predicated region
      $region61: #{tpu_custom_call.1} parent=5 // pred_check
        _
      $region62: #{tpu_custom_call.1} parent=5 // pred_check_branch
        %374 = sbr.rel (%p371) target = $region64
      $region63: #{tpu_custom_call.1} parent=5 // pred_region
        %s375 = ssub.s32 %s22, 1
        %s376 = smul.u32 16, %s27
        %p377 = scmp.lt.s32.totalorder %s376, 31
        %s378 = scalar_select %p377, %s376, 31
        %s379 = smul.addr %s378, 8
        %s380 = scalar_lea.vmem %s0, %s379
        %p381 = pneg %p48
        %p382 = pneg %p45
        %s383 = smul.u32 16, %s27
        %p384 = scmp.lt.s32.totalorder %s383, 31
        %s385 = scalar_select %p384, %s383, 31
        %s386 = smul.addr %s385, 8
        %s387 = scalar_lea.vmem %s1, %s386
        %p388 = pneg %p74
        %p389 = pneg %p71
        %p390 = pneg %p95
        %p391 = pneg %p92
        %p392 = pneg %p116
        %p393 = pneg %p113
        %p394 = pneg %p137
        %p395 = pneg %p134
        %p396 = pneg %p158
        %p397 = pneg %p155
        %p398 = pneg %p179
        %p399 = pneg %p176
        %p400 = pneg %p200
        %p401 = pneg %p197
        %p402 = pneg %p221
        %p403 = pneg %p218
        %p404 = pneg %p242
        %p405 = pneg %p239
        %p406 = pneg %p263
        %p407 = pneg %p260
        %p408 = pneg %p284
        %p409 = pneg %p281
        %p410 = pneg %p305
        %p411 = pneg %p302
        %s412 = smul.u32 16, %s27
        %p413 = scmp.lt.s32.totalorder %s412, 31
        %s414 = scalar_select %p413, %s412, 31
        %s415 = smul.addr %s414, 8
        %s416 = scalar_lea.vmem %s0, %s415
        %s417 = smul.u32 16, %s27
        %s418 = smul.u32 16, %s27
        %p419 = scmp.lt.s32.totalorder %s418, 31
        %s420 = scalar_select %p419, %s418, 31
        %s421 = smul.addr %s420, 8
        %s422 = scalar_lea.vmem %s1, %s421
        %s423 = smul.u32 16, %s27
        %p424 = scmp.eq.s32.totalorder %s27, 0
        // Predicated region
        $region65: #{tpu_custom_call.1} parent=63 // pred_check
          %p425 = pneg %p424
        $region66: #{tpu_custom_call.1} parent=63 // pred_check_branch
          %427 = sbr.rel (%p425) target = $region68
        $region67: #{tpu_custom_call.1} parent=63 // pred_region
          %vm428 = vcmask 261120
          %429 = vst.msk [vmem:[#allocation2] sm:$0xff] %vm428, 0.0
          %430 = vst.msk [vmem:[#allocation2 + $0x8] sm:$0xff] %vm428, 0.0
          %vm431 = vcmask 7168
          %432 = vst.msk [vmem:[#allocation3] sm:$0xff] %vm431, 0.0
          %433 = vst.msk [vmem:[#allocation3 + $0x8] sm:$0xff] %vm431, 0.0
        $region68: #{tpu_custom_call.1} parent=63 // pred_fallthru
          _
        %v434 = vld [vmem:[%s416] sm:$0xff]
        %v435 = vld [vmem:[%s416 + $0x8] sm:$0xff]
        %v436 = vld [vmem:[%s416 + $0x10] sm:$0xff]
        %v437 = vld [vmem:[%s416 + $0x18] sm:$0xff]
        %v438 = vld [vmem:[%s416 + $0x20] sm:$0xff]
        %v439 = vld [vmem:[%s416 + $0x28] sm:$0xff]
        %v440 = vld [vmem:[%s416 + $0x30] sm:$0xff]
        %v441 = vld [vmem:[%s416 + $0x38] sm:$0xff]
        %v442 = vld [vmem:[%s416 + $0x40] sm:$0xff]
        %v443 = vld [vmem:[%s416 + $0x48] sm:$0xff]
        %v444 = vld [vmem:[%s416 + $0x50] sm:$0xff]
        %v445 = vld [vmem:[%s416 + $0x58] sm:$0xff]
        %v446 = vld [vmem:[%s416 + $0x60] sm:$0xff]
        %v447 = vld [vmem:[%s416 + $0x68] sm:$0xff]
        %v448 = vld [vmem:[%s416 + $0x70] sm:$0xff]
        %v449 = vld [vmem:[%s416 + $0x78] sm:$0xff]
        %v450 = vld [vmem:[#allocation2] sm:$0xff]
        %v451 = vld [vmem:[#allocation2 + $0x8] sm:$0xff]
        %v452 = vld [vmem:[%s422] sm:$0xff]
        %v453 = vld [vmem:[%s422 + $0x8] sm:$0xff]
        %v454 = vld [vmem:[%s422 + $0x10] sm:$0xff]
        %v455 = vld [vmem:[%s422 + $0x18] sm:$0xff]
        %v456 = vld [vmem:[%s422 + $0x20] sm:$0xff]
        %v457 = vld [vmem:[%s422 + $0x28] sm:$0xff]
        %v458 = vld [vmem:[%s422 + $0x30] sm:$0xff]
        %v459 = vld [vmem:[%s422 + $0x38] sm:$0xff]
        %v460 = vld [vmem:[%s422 + $0x40] sm:$0xff]
        %v461 = vld [vmem:[%s422 + $0x48] sm:$0xff]
        %v462 = vld [vmem:[%s422 + $0x50] sm:$0xff]
        %v463 = vld [vmem:[%s422 + $0x58] sm:$0xff]
        %v464 = vld [vmem:[%s422 + $0x60] sm:$0xff]
        %v465 = vld [vmem:[%s422 + $0x68] sm:$0xff]
        %v466 = vld [vmem:[%s422 + $0x70] sm:$0xff]
        %v467 = vld [vmem:[%s422 + $0x78] sm:$0xff]
        %468 = vxpose.xlu0.b32.start [1/16] %v434, 128
        %469 = vxpose.xlu0.b32.cont [2/16] %v435, 128
        %470 = vxpose.xlu0.b32.cont [3/16] %v436, 128
        %471 = vxpose.xlu0.b32.cont [4/16] %v437, 128
        %472 = vxpose.xlu0.b32.cont [5/16] %v438, 128
        %473 = vxpose.xlu0.b32.cont [6/16] %v439, 128
        %474 = vxpose.xlu0.b32.cont [7/16] %v440, 128
        %475 = vxpose.xlu0.b32.cont [8/16] %v441, 128
        %476 = vxpose.xlu0.b32.cont [9/16] %v442, 128
        %477 = vxpose.xlu0.b32.cont [10/16] %v443, 128
        %478 = vxpose.xlu0.b32.cont [11/16] %v444, 128
        %479 = vxpose.xlu0.b32.cont [12/16] %v445, 128
        %480 = vxpose.xlu0.b32.cont [13/16] %v446, 128
        %481 = vxpose.xlu0.b32.cont [14/16] %v447, 128
        %482 = vxpose.xlu0.b32.cont [15/16] %v448, 128
        %483 = vxpose.xlu0.b32.end [16/16] %v449, 128
        %v484 = vpop.trf.xlu0
        %v485 = vpop.trf.xlu0
        %v486 = vpop.trf.xlu0
        %v487 = vpop.trf.xlu0
        %v488 = vpop.trf.xlu0
        %v489 = vpop.trf.xlu0
        %v490 = vpop.trf.xlu0
        %v491 = vpop.trf.xlu0
        %v492 = vpop.trf.xlu0
        %v493 = vpop.trf.xlu0
        %v494 = vpop.trf.xlu0
        %v495 = vpop.trf.xlu0
        %v496 = vpop.trf.xlu0
        %v497 = vpop.trf.xlu0
        %v498 = vpop.trf.xlu0
        %v499 = vpop.trf.xlu0
        %500 = vmatprep.subr.mxu0 0.0
        %501 = vmatpush1.msra.mxu0 %v452
        %502 = vmatprep.subr.mxu0 0.0
        %503 = vmatpush1.msra.mxu0 %v453
        %504 = vmatprep.subr.mxu0 0.0
        %505 = vmatpush1.msra.mxu0 %v454
        %506 = vmatprep.subr.mxu0 0.0
        %507 = vmatpush1.msra.mxu0 %v455
        %508 = vmatprep.subr.mxu0 0.0
        %509 = vmatpush1.msra.mxu0 %v456
        %510 = vmatprep.subr.mxu0 0.0
        %511 = vmatpush1.msra.mxu0 %v457
        %512 = vmatprep.subr.mxu0 0.0
        %513 = vmatpush1.msra.mxu0 %v458
        %514 = vmatprep.subr.mxu0 0.0
        %515 = vmatpush1.msra.mxu0 %v459
        %516 = vmatprep.subr.mxu0 0.0
        %517 = vmatpush1.msra.mxu0 %v460
        %518 = vmatprep.subr.mxu0 0.0
        %519 = vmatpush1.msra.mxu0 %v461
        %520 = vmatprep.subr.mxu0 0.0
        %521 = vmatpush1.msra.mxu0 %v462
        %522 = vmatprep.subr.mxu0 0.0
        %523 = vmatpush1.msra.mxu0 %v463
        %524 = vmatprep.subr.mxu0 0.0
        %525 = vmatpush1.msra.mxu0 %v464
        %526 = vmatprep.subr.mxu0 0.0
        %527 = vmatpush1.msra.mxu0 %v465
        %528 = vmatprep.subr.mxu0 0.0
        %529 = vmatpush1.msra.mxu0 %v466
        %530 = vmatprep.subr.mxu0 0.0
        %531 = vmatpush1.msra.mxu0 %v467
        %532 = vmatprep.subr.mxu0 0.0
        %533 = vmatpush1.msra.mxu0 0.0
        %534 = vmatprep.subr.mxu0 0.0
        %535 = vmatpush1.msra.mxu0 0.0
        %536 = vmatprep.subr.mxu0 0.0
        %537 = vmatpush1.msra.mxu0 0.0
        %538 = vmatprep.subr.mxu0 0.0
        %539 = vmatpush1.msra.mxu0 0.0
        %540 = vmatprep.subr.mxu0 0.0
        %541 = vmatpush1.msra.mxu0 0.0
        %542 = vmatprep.subr.mxu0 0.0
        %543 = vmatpush1.msra.mxu0 0.0
        %544 = vmatprep.subr.mxu0 0.0
        %545 = vmatpush1.msra.mxu0 0.0
        %546 = vmatprep.subr.mxu0 0.0
        %547 = vmatpush1.msra.mxu0 0.0
        %548 = vmatprep.subr.mxu0 0.0
        %549 = vmatpush1.msra.mxu0 0.0
        %550 = vmatprep.subr.mxu0 0.0
        %551 = vmatpush1.msra.mxu0 0.0
        %552 = vmatprep.subr.mxu0 0.0
        %553 = vmatpush1.msra.mxu0 0.0
        %554 = vmatprep.subr.mxu0 0.0
        %555 = vmatpush1.msra.mxu0 0.0
        %556 = vmatprep.subr.mxu0 0.0
        %557 = vmatpush1.msra.mxu0 0.0
        %558 = vmatprep.subr.mxu0 0.0
        %559 = vmatpush1.msra.mxu0 0.0
        %560 = vmatprep.subr.mxu0 0.0
        %561 = vmatpush1.msra.mxu0 0.0
        %562 = vmatprep.subr.mxu0 0.0
        %563 = vmatpush1.msra.mxu0 0.0
        %564 = vmatprep.mubr.f32.mxu0 0.0
        %565 = vmatmul.mubr.f32.gmra.mrb[0].mxu0 %v484
        %v566 = vpop.f32.mrb[0].mxu0
        %v567 = vadd.f32 0.0, %v566
        %v568 = vpop.f32.mrb[0].mxu0
        %569 = vmatprep.mubr.f32.mxu0 0.0
        %570 = vmatmul.mubr.f32.gmra.mrb[0].mxu0 %v485
        %v571 = vpop.f32.mrb[0].mxu0
        %v572 = vadd.f32 0.0, %v571
        %v573 = vpop.f32.mrb[0].mxu0
        %574 = vdwg.mxu0
        %v575 = vadd.f32 %v450, %v567
        %v576 = vadd.f32 %v451, %v572
        %vm577 = vcmask 261120
        %578 = vst.msk [vmem:[#allocation2] sm:$0xff] %vm577, %v575
        %579 = vst.msk [vmem:[#allocation2 + $0x8] sm:$0xff] %vm577, %v576
        %v580 = vld [vmem:[#allocation3] sm:$0xff]
        %v581 = vld [vmem:[#allocation3 + $0x8] sm:$0xff]
        %582 = vmatprep.subr.mxu0 0.0
        %583 = vmatpush1.msra.mxu0 1.0
        %584 = vmatprep.subr.mxu0 0.0
        %585 = vmatpush1.msra.mxu0 1.0
        %586 = vmatprep.subr.mxu0 0.0
        %587 = vmatpush1.msra.mxu0 1.0
        %588 = vmatprep.subr.mxu0 0.0
        %589 = vmatpush1.msra.mxu0 1.0
        %590 = vmatprep.subr.mxu0 0.0
        %591 = vmatpush1.msra.mxu0 1.0
        %592 = vmatprep.subr.mxu0 0.0
        %593 = vmatpush1.msra.mxu0 1.0
        %594 = vmatprep.subr.mxu0 0.0
        %595 = vmatpush1.msra.mxu0 1.0
        %596 = vmatprep.subr.mxu0 0.0
        %597 = vmatpush1.msra.mxu0 1.0
        %598 = vmatprep.subr.mxu0 0.0
        %599 = vmatpush1.msra.mxu0 1.0
        %600 = vmatprep.subr.mxu0 0.0
        %601 = vmatpush1.msra.mxu0 1.0
        %602 = vmatprep.subr.mxu0 0.0
        %603 = vmatpush1.msra.mxu0 1.0
        %604 = vmatprep.subr.mxu0 0.0
        %605 = vmatpush1.msra.mxu0 1.0
        %606 = vmatprep.subr.mxu0 0.0
        %607 = vmatpush1.msra.mxu0 1.0
        %608 = vmatprep.subr.mxu0 0.0
        %609 = vmatpush1.msra.mxu0 1.0
        %610 = vmatprep.subr.mxu0 0.0
        %611 = vmatpush1.msra.mxu0 1.0
        %612 = vmatprep.subr.mxu0 0.0
        %613 = vmatpush1.msra.mxu0 1.0
        %614 = vmatprep.subr.mxu0 0.0
        %615 = vmatpush1.msra.mxu0 0.0
        %616 = vmatprep.subr.mxu0 0.0
        %617 = vmatpush1.msra.mxu0 0.0
        %618 = vmatprep.subr.mxu0 0.0
        %619 = vmatpush1.msra.mxu0 0.0
        %620 = vmatprep.subr.mxu0 0.0
        %621 = vmatpush1.msra.mxu0 0.0
        %622 = vmatprep.subr.mxu0 0.0
        %623 = vmatpush1.msra.mxu0 0.0
        %624 = vmatprep.subr.mxu0 0.0
        %625 = vmatpush1.msra.mxu0 0.0
        %626 = vmatprep.subr.mxu0 0.0
        %627 = vmatpush1.msra.mxu0 0.0
        %628 = vmatprep.subr.mxu0 0.0
        %629 = vmatpush1.msra.mxu0 0.0
        %630 = vmatprep.subr.mxu0 0.0
        %631 = vmatpush1.msra.mxu0 0.0
        %632 = vmatprep.subr.mxu0 0.0
        %633 = vmatpush1.msra.mxu0 0.0
        %634 = vmatprep.subr.mxu0 0.0
        %635 = vmatpush1.msra.mxu0 0.0
        %636 = vmatprep.subr.mxu0 0.0
        %637 = vmatpush1.msra.mxu0 0.0
        %638 = vmatprep.subr.mxu0 0.0
        %639 = vmatpush1.msra.mxu0 0.0
        %640 = vmatprep.subr.mxu0 0.0
        %641 = vmatpush1.msra.mxu0 0.0
        %642 = vmatprep.subr.mxu0 0.0
        %643 = vmatpush1.msra.mxu0 0.0
        %644 = vmatprep.subr.mxu0 0.0
        %645 = vmatpush1.msra.mxu0 0.0
        %646 = vmatprep.mubr.f32.mxu0 0.0
        %647 = vmatmul.mubr.f32.gmra.mrb[0].mxu0 %v484
        %v648 = vpop.f32.mrb[0].mxu0
        %v649 = vadd.f32 0.0, %v648
        %v650 = vpop.f32.mrb[0].mxu0
        %651 = vmatprep.mubr.f32.mxu0 0.0
        %652 = vmatmul.mubr.f32.gmra.mrb[0].mxu0 %v485
        %v653 = vpop.f32.mrb[0].mxu0
        %v654 = vadd.f32 0.0, %v653
        %v655 = vpop.f32.mrb[0].mxu0
        %656 = vdwg.mxu0
        %v657 = vadd.f32 %v580, %v649
        %v658 = vadd.f32 %v581, %v654
        %vm659 = vcmask 7168
        %660 = vst.msk [vmem:[#allocation3] sm:$0xff] %vm659, %v657
        %661 = vst.msk [vmem:[#allocation3 + $0x8] sm:$0xff] %vm659, %v658
        %p662 = scmp.eq.s32.totalorder %s27, 1
        // Predicated region
        $region69: #{tpu_custom_call.1} parent=63 // pred_check
          %p663 = pneg %p662
        $region70: #{tpu_custom_call.1} parent=63 // pred_check_branch
          %665 = sbr.rel (%p663) target = $region72
        $region71: #{tpu_custom_call.1} parent=63 // pred_region
          %v666 = vld [vmem:[#allocation3] sm:$0xff]
          %v667 = vld [vmem:[#allocation3 + $0x8] sm:$0xff]
          %v668 = vsub.f32 %v666, 1.0
          %v669 = vsub.f32 %v667, 1.0
          %v670 = vmax.f32 %v668, 0.0
          %v671 = vmax.f32 %v669, 0.0
          %v672 = vadd.f32 %v670, 1.0
          %v673 = vadd.f32 %v671, 1.0
          %v674 = vrcp.pop %v672
          %v675 = vmul.f32 1.0, %v674
          %v676 = vrcp.pop %v673
          %v677 = vmul.f32 1.0, %v676
          %v678 = vld [vmem:[#allocation2] sm:$0xff]
          %v679 = vld [vmem:[#allocation2 + $0x8] sm:$0xff]
          %681 = vset.pattern.permute.xlu0 0
          %682 = vperm.xlu0 %681, %v675
          %v683 = vpop.permute.xlu0 %682
          %686 = vset.pattern.permute.xlu0 0
          %687 = vperm.xlu0 %686, %v677
          %v688 = vpop.permute.xlu0 %687
          %v690 = vmul.f32 %v683, %v678
          %v691 = vmul.f32 %v688, %v679
          %v692 = vld [vmem:[%s3] sm:$0xff]
          %v693 = vld [vmem:[%s3 + $0x8] sm:$0xff]
          %vm694 = vcmask 64512
          %v695 = vsel %vm694, %v692, 0.0
          %v696 = vsel %vm694, %v693, 0.0
          %v697 = vadd.f32 %v695, %v696
          %v698 = vrot.slane %v697, 4
          %v699 = vadd.f32 %v697, %v698
          %v700 = vrot.slane %v699, 2
          %v701 = vadd.f32 %v699, %v700
          %v702 = vrot.slane %v701, 1
          %v703 = vadd.f32 %v701, %v702
          %v704 = vsub.f32 %v703, 1.0
          %v705 = vmax.f32 %v704, 0.0
          %v706 = vadd.f32 %v705, 1.0
          %v707 = vrcp.pop %v706
          %v708 = vmul.f32 %v692, %v707
          %v709 = vmul.f32 %v693, %v707
          %710 = vxpose.xlu0.b32.start [1/16] %v708, 128
          %711 = vxpose.xlu0.b32.cont [2/16] %v709, 128
          %712 = vxpose.xlu0.b32.cont [3/16] 0.0, 128
          %713 = vxpose.xlu0.b32.cont [4/16] 0.0, 128
          %714 = vxpose.xlu0.b32.cont [5/16] 0.0, 128
          %715 = vxpose.xlu0.b32.cont [6/16] 0.0, 128
          %716 = vxpose.xlu0.b32.cont [7/16] 0.0, 128
          %717 = vxpose.xlu0.b32.cont [8/16] 0.0, 128
          %718 = vxpose.xlu0.b32.cont [9/16] 0.0, 128
          %719 = vxpose.xlu0.b32.cont [10/16] 0.0, 128
          %720 = vxpose.xlu0.b32.cont [11/16] 0.0, 128
          %721 = vxpose.xlu0.b32.cont [12/16] 0.0, 128
          %722 = vxpose.xlu0.b32.cont [13/16] 0.0, 128
          %723 = vxpose.xlu0.b32.cont [14/16] 0.0, 128
          %724 = vxpose.xlu0.b32.cont [15/16] 0.0, 128
          %725 = vxpose.xlu0.b32.end [16/16] 0.0, 128
          %v726 = vpop.trf.xlu0
          %v727 = vpop.trf.xlu0
          %v728 = vpop.trf.xlu0
          %v729 = vpop.trf.xlu0
          %v730 = vpop.trf.xlu0
          %v731 = vpop.trf.xlu0
          %v732 = vpop.trf.xlu0
          %v733 = vpop.trf.xlu0
          %v734 = vpop.trf.xlu0
          %v735 = vpop.trf.xlu0
          %v736 = vpop.trf.xlu0
          %v737 = vpop.trf.xlu0
          %v738 = vpop.trf.xlu0
          %v739 = vpop.trf.xlu0
          %v740 = vpop.trf.xlu0
          %v741 = vpop.trf.xlu0
          %vm742 = vcmask 130048
          %v744 = vsel %vm742, %v726, 0
          %746 = vmatprep.subr.mxu0 0.0
          %747 = vmatpush1.msra.mxu0 %v690
          %748 = vmatprep.subr.mxu0 0.0
          %749 = vmatpush1.msra.mxu0 %v691
          %750 = vmatprep.subr.mxu0 0.0
          %751 = vmatpush1.msra.mxu0 0.0
          %752 = vmatprep.subr.mxu0 0.0
          %753 = vmatpush1.msra.mxu0 0.0
          %754 = vmatprep.subr.mxu0 0.0
          %755 = vmatpush1.msra.mxu0 0.0
          %756 = vmatprep.subr.mxu0 0.0
          %757 = vmatpush1.msra.mxu0 0.0
          %758 = vmatprep.subr.mxu0 0.0
          %759 = vmatpush1.msra.mxu0 0.0
          %760 = vmatprep.subr.mxu0 0.0
          %761 = vmatpush1.msra.mxu0 0.0
          %762 = vmatprep.subr.mxu0 0.0
          %763 = vmatpush1.msra.mxu0 0.0
          %764 = vmatprep.subr.mxu0 0.0
          %765 = vmatpush1.msra.mxu0 0.0
          %766 = vmatprep.subr.mxu0 0.0
          %767 = vmatpush1.msra.mxu0 0.0
          %768 = vmatprep.subr.mxu0 0.0
          %769 = vmatpush1.msra.mxu0 0.0
          %770 = vmatprep.subr.mxu0 0.0
          %771 = vmatpush1.msra.mxu0 0.0
          %772 = vmatprep.subr.mxu0 0.0
          %773 = vmatpush1.msra.mxu0 0.0
          %774 = vmatprep.subr.mxu0 0.0
          %775 = vmatpush1.msra.mxu0 0.0
          %776 = vmatprep.subr.mxu0 0.0
          %777 = vmatpush1.msra.mxu0 0.0
          %778 = vmatprep.subr.mxu0 0.0
          %779 = vmatpush1.msra.mxu0 0.0
          %780 = vmatprep.subr.mxu0 0.0
          %781 = vmatpush1.msra.mxu0 0.0
          %782 = vmatprep.subr.mxu0 0.0
          %783 = vmatpush1.msra.mxu0 0.0
          %784 = vmatprep.subr.mxu0 0.0
          %785 = vmatpush1.msra.mxu0 0.0
          %786 = vmatprep.subr.mxu0 0.0
          %787 = vmatpush1.msra.mxu0 0.0
          %788 = vmatprep.subr.mxu0 0.0
          %789 = vmatpush1.msra.mxu0 0.0
          %790 = vmatprep.subr.mxu0 0.0
          %791 = vmatpush1.msra.mxu0 0.0
          %792 = vmatprep.subr.mxu0 0.0
          %793 = vmatpush1.msra.mxu0 0.0
          %794 = vmatprep.subr.mxu0 0.0
          %795 = vmatpush1.msra.mxu0 0.0
          %796 = vmatprep.subr.mxu0 0.0
          %797 = vmatpush1.msra.mxu0 0.0
          %798 = vmatprep.subr.mxu0 0.0
          %799 = vmatpush1.msra.mxu0 0.0
          %800 = vmatprep.subr.mxu0 0.0
          %801 = vmatpush1.msra.mxu0 0.0
          %802 = vmatprep.subr.mxu0 0.0
          %803 = vmatpush1.msra.mxu0 0.0
          %804 = vmatprep.subr.mxu0 0.0
          %805 = vmatpush1.msra.mxu0 0.0
          %806 = vmatprep.subr.mxu0 0.0
          %807 = vmatpush1.msra.mxu0 0.0
          %808 = vmatprep.subr.mxu0 0.0
          %809 = vmatpush1.msra.mxu0 0.0
          %810 = vmatprep.mubr.f32.mxu0 0.0
          %811 = vmatmul.mubr.f32.gmra.mrb[0].mxu0 %v744
          %v812 = vpop.f32.mrb[0].mxu0
          %v813 = vadd.f32 0.0, %v812
          %v814 = vpop.f32.mrb[0].mxu0
          %815 = vdwg.mxu0
          %v817 = vsel %vm577, %v813, 0
          %819 = vmatprep.subr.mxu0 0.0
          %820 = vmatpush1.xpose.msra.mxu0 %v817
          %821 = vmatprep.subr.mxu0 0.0
          %822 = vmatpush1.xpose.msra.mxu0 0.0
          %823 = vmatprep.subr.mxu0 0.0
          %824 = vmatpush1.xpose.msra.mxu0 0.0
          %825 = vmatprep.subr.mxu0 0.0
          %826 = vmatpush1.xpose.msra.mxu0 0.0
          %827 = vmatprep.subr.mxu0 0.0
          %828 = vmatpush1.xpose.msra.mxu0 0.0
          %829 = vmatprep.subr.mxu0 0.0
          %830 = vmatpush1.xpose.msra.mxu0 0.0
          %831 = vmatprep.subr.mxu0 0.0
          %832 = vmatpush1.xpose.msra.mxu0 0.0
          %833 = vmatprep.subr.mxu0 0.0
          %834 = vmatpush1.xpose.msra.mxu0 0.0
          %835 = vmatprep.subr.mxu0 0.0
          %836 = vmatpush1.xpose.msra.mxu0 0.0
          %837 = vmatprep.subr.mxu0 0.0
          %838 = vmatpush1.xpose.msra.mxu0 0.0
          %839 = vmatprep.subr.mxu0 0.0
          %840 = vmatpush1.xpose.msra.mxu0 0.0
          %841 = vmatprep.subr.mxu0 0.0
          %842 = vmatpush1.xpose.msra.mxu0 0.0
          %843 = vmatprep.subr.mxu0 0.0
          %844 = vmatpush1.xpose.msra.mxu0 0.0
          %845 = vmatprep.subr.mxu0 0.0
          %846 = vmatpush1.xpose.msra.mxu0 0.0
          %847 = vmatprep.subr.mxu0 0.0
          %848 = vmatpush1.xpose.msra.mxu0 0.0
          %849 = vmatprep.subr.mxu0 0.0
          %850 = vmatpush1.xpose.msra.mxu0 0.0
          %851 = vmatprep.subr.mxu0 0.0
          %852 = vmatpush1.xpose.msra.mxu0 0.0
          %853 = vmatprep.subr.mxu0 0.0
          %854 = vmatpush1.xpose.msra.mxu0 0.0
          %855 = vmatprep.subr.mxu0 0.0
          %856 = vmatpush1.xpose.msra.mxu0 0.0
          %857 = vmatprep.subr.mxu0 0.0
          %858 = vmatpush1.xpose.msra.mxu0 0.0
          %859 = vmatprep.subr.mxu0 0.0
          %860 = vmatpush1.xpose.msra.mxu0 0.0
          %861 = vmatprep.subr.mxu0 0.0
          %862 = vmatpush1.xpose.msra.mxu0 0.0
          %863 = vmatprep.subr.mxu0 0.0
          %864 = vmatpush1.xpose.msra.mxu0 0.0
          %865 = vmatprep.subr.mxu0 0.0
          %866 = vmatpush1.xpose.msra.mxu0 0.0
          %867 = vmatprep.subr.mxu0 0.0
          %868 = vmatpush1.xpose.msra.mxu0 0.0
          %869 = vmatprep.subr.mxu0 0.0
          %870 = vmatpush1.xpose.msra.mxu0 0.0
          %871 = vmatprep.subr.mxu0 0.0
          %872 = vmatpush1.xpose.msra.mxu0 0.0
          %873 = vmatprep.subr.mxu0 0.0
          %874 = vmatpush1.xpose.msra.mxu0 0.0
          %875 = vmatprep.subr.mxu0 0.0
          %876 = vmatpush1.xpose.msra.mxu0 0.0
          %877 = vmatprep.subr.mxu0 0.0
          %878 = vmatpush1.xpose.msra.mxu0 0.0
          %879 = vmatprep.subr.mxu0 0.0
          %880 = vmatpush1.xpose.msra.mxu0 0.0
          %881 = vmatprep.subr.mxu0 0.0
          %882 = vmatpush1.xpose.msra.mxu0 0.0
          %883 = vmatprep.mubr.f32.mxu0 0.0
          %884 = vmatmul.mubr.f32.gmra.mrb[0].mxu0 %v817
          %v885 = vpop.f32.mrb[0].mxu0
          %v886 = vadd.f32 0.0, %v885
          %v887 = vpop.f32.mrb[0].mxu0
          %888 = vdwg.mxu0
          %v889 = vxor.u32 %v886, 2147483648
          %v890 = vmul.f32 %v889, 1.442695
          %v891 = vpow.pop %v890
          %v892 = vadd.f32 %v891, 1.0
          %v893 = vrcp.pop %v892
          %v894 = vmul.f32 1.0, %v893
          %v895 = vlaneseq
          %v896 = vshrl.u32 %v895, 7
          %v897 = vlaneseq
          %v898 = vand.u32 %v897, 127
          %vm899 = vcmp.eq.s32.totalorder %v896, %v898
          %v900 = vsel %vm899, 1, 0
          %v901 = vcvt.s32.f32 %v900
          %v902 = vmul.f32 %v901, 2.0
          %v903 = vadd.f32 %v894, %v902
          %v904 = vld [vmem:[%s4] sm:$0xff]
          %v905 = vld [vmem:[%s4 + $0x8] sm:$0xff]
          %v906 = vld [vmem:[%s4 + $0x10] sm:$0xff]
          %v907 = vld [vmem:[%s4 + $0x18] sm:$0xff]
          %v908 = vld [vmem:[%s5] sm:$0x1]
          %v909 = vand.u32 2147483647, %v903
          %v910 = vsel %vm694, %v909, 0.0
          %911 = vadd.xlane.f32.xlu0 %v910
          %v912 = vpop.xlane.xlu0 %911
          %v913 = vrsqrt.pop %v912
          %914 = vmatprep.subr.mxu0 0.0
          %915 = vmatpush1.msra.mxu0 %v904
          %916 = vmatprep.subr.mxu0 0.0
          %917 = vmatpush1.msra.mxu0 %v905
          %918 = vmatprep.subr.mxu0 0.0
          %919 = vmatpush1.msra.mxu0 %v906
          %920 = vmatprep.subr.mxu0 0.0
          %921 = vmatpush1.msra.mxu0 %v907
          %922 = vmatprep.subr.mxu0 0.0
          %923 = vmatpush1.msra.mxu0 0.0
          %924 = vmatprep.subr.mxu0 0.0
          %925 = vmatpush1.msra.mxu0 0.0
          %926 = vmatprep.subr.mxu0 0.0
          %927 = vmatpush1.msra.mxu0 0.0
          %928 = vmatprep.subr.mxu0 0.0
          %929 = vmatpush1.msra.mxu0 0.0
          %930 = vmatprep.subr.mxu0 0.0
          %931 = vmatpush1.msra.mxu0 0.0
          %932 = vmatprep.subr.mxu0 0.0
          %933 = vmatpush1.msra.mxu0 0.0
          %934 = vmatprep.subr.mxu0 0.0
          %935 = vmatpush1.msra.mxu0 0.0
          %936 = vmatprep.subr.mxu0 0.0
          %937 = vmatpush1.msra.mxu0 0.0
          %938 = vmatprep.subr.mxu0 0.0
          %939 = vmatpush1.msra.mxu0 0.0
          %940 = vmatprep.subr.mxu0 0.0
          %941 = vmatpush1.msra.mxu0 0.0
          %942 = vmatprep.subr.mxu0 0.0
          %943 = vmatpush1.msra.mxu0 0.0
          %944 = vmatprep.subr.mxu0 0.0
          %945 = vmatpush1.msra.mxu0 0.0
          %946 = vmatprep.subr.mxu0 0.0
          %947 = vmatpush1.msra.mxu0 0.0
          %948 = vmatprep.subr.mxu0 0.0
          %949 = vmatpush1.msra.mxu0 0.0
          %950 = vmatprep.subr.mxu0 0.0
          %951 = vmatpush1.msra.mxu0 0.0
          %952 = vmatprep.subr.mxu0 0.0
          %953 = vmatpush1.msra.mxu0 0.0
          %954 = vmatprep.subr.mxu0 0.0
          %955 = vmatpush1.msra.mxu0 0.0
          %956 = vmatprep.subr.mxu0 0.0
          %957 = vmatpush1.msra.mxu0 0.0
          %958 = vmatprep.subr.mxu0 0.0
          %959 = vmatpush1.msra.mxu0 0.0
          %960 = vmatprep.subr.mxu0 0.0
          %961 = vmatpush1.msra.mxu0 0.0
          %962 = vmatprep.subr.mxu0 0.0
          %963 = vmatpush1.msra.mxu0 0.0
          %964 = vmatprep.subr.mxu0 0.0
          %965 = vmatpush1.msra.mxu0 0.0
          %966 = vmatprep.subr.mxu0 0.0
          %967 = vmatpush1.msra.mxu0 0.0
          %968 = vmatprep.subr.mxu0 0.0
          %969 = vmatpush1.msra.mxu0 0.0
          %970 = vmatprep.subr.mxu0 0.0
          %971 = vmatpush1.msra.mxu0 0.0
          %972 = vmatprep.subr.mxu0 0.0
          %973 = vmatpush1.msra.mxu0 0.0
          %974 = vmatprep.subr.mxu0 0.0
          %975 = vmatpush1.msra.mxu0 0.0
          %976 = vmatprep.subr.mxu0 0.0
          %977 = vmatpush1.msra.mxu0 0.0
          %978 = vmatprep.mubr.f32.mxu0 0.0
          %979 = vmatmul.mubr.f32.gmra.mrb[0].mxu0 %v817
          %v980 = vpop.f32.mrb[0].mxu0
          %v981 = vadd.f32 0.0, %v980
          %v982 = vpop.f32.mrb[0].mxu0
          %983 = vdwg.mxu0
          %v984 = vmul.f32 %v913, %v981
          %v986 = vsel %vm694, %v903, 0
          %988 = vmatprep.subr.mxu0 0.0
          %989 = vmatpush1.msra.mxu0 %v984
          %990 = vmatprep.subr.mxu0 0.0
          %991 = vmatpush1.msra.mxu0 0.0
          %992 = vmatprep.subr.mxu0 0.0
          %993 = vmatpush1.msra.mxu0 0.0
          %994 = vmatprep.subr.mxu0 0.0
          %995 = vmatpush1.msra.mxu0 0.0
          %996 = vmatprep.subr.mxu0 0.0
          %997 = vmatpush1.msra.mxu0 0.0
          %998 = vmatprep.subr.mxu0 0.0
          %999 = vmatpush1.msra.mxu0 0.0
          %1000 = vmatprep.subr.mxu0 0.0
          %1001 = vmatpush1.msra.mxu0 0.0
          %1002 = vmatprep.subr.mxu0 0.0
          %1003 = vmatpush1.msra.mxu0 0.0
          %1004 = vmatprep.subr.mxu0 0.0
          %1005 = vmatpush1.msra.mxu0 0.0
          %1006 = vmatprep.subr.mxu0 0.0
          %1007 = vmatpush1.msra.mxu0 0.0
          %1008 = vmatprep.subr.mxu0 0.0
          %1009 = vmatpush1.msra.mxu0 0.0
          %1010 = vmatprep.subr.mxu0 0.0
          %1011 = vmatpush1.msra.mxu0 0.0
          %1012 = vmatprep.subr.mxu0 0.0
          %1013 = vmatpush1.msra.mxu0 0.0
          %1014 = vmatprep.subr.mxu0 0.0
          %1015 = vmatpush1.msra.mxu0 0.0
          %1016 = vmatprep.subr.mxu0 0.0
          %1017 = vmatpush1.msra.mxu0 0.0
          %1018 = vmatprep.subr.mxu0 0.0
          %1019 = vmatpush1.msra.mxu0 0.0
          %1020 = vmatprep.subr.mxu0 0.0
          %1021 = vmatpush1.msra.mxu0 0.0
          %1022 = vmatprep.subr.mxu0 0.0
          %1023 = vmatpush1.msra.mxu0 0.0
          %1024 = vmatprep.subr.mxu0 0.0
          %1025 = vmatpush1.msra.mxu0 0.0
          %1026 = vmatprep.subr.mxu0 0.0
          %1027 = vmatpush1.msra.mxu0 0.0
          %1028 = vmatprep.subr.mxu0 0.0
          %1029 = vmatpush1.msra.mxu0 0.0
          %1030 = vmatprep.subr.mxu0 0.0
          %1031 = vmatpush1.msra.mxu0 0.0
          %1032 = vmatprep.subr.mxu0 0.0
          %1033 = vmatpush1.msra.mxu0 0.0
          %1034 = vmatprep.subr.mxu0 0.0
          %1035 = vmatpush1.msra.mxu0 0.0
          %1036 = vmatprep.subr.mxu0 0.0
          %1037 = vmatpush1.msra.mxu0 0.0
          %1038 = vmatprep.subr.mxu0 0.0
          %1039 = vmatpush1.msra.mxu0 0.0
          %1040 = vmatprep.subr.mxu0 0.0
          %1041 = vmatpush1.msra.mxu0 0.0
          %1042 = vmatprep.subr.mxu0 0.0
          %1043 = vmatpush1.msra.mxu0 0.0
          %1044 = vmatprep.subr.mxu0 0.0
          %1045 = vmatpush1.msra.mxu0 0.0
          %1046 = vmatprep.subr.mxu0 0.0
          %1047 = vmatpush1.msra.mxu0 0.0
          %1048 = vmatprep.subr.mxu0 0.0
          %1049 = vmatpush1.msra.mxu0 0.0
          %1050 = vmatprep.subr.mxu0 0.0
          %1051 = vmatpush1.msra.mxu0 0.0
          %1052 = vmatprep.mubr.f32.mxu0 0.0
          %1053 = vmatmul.mubr.f32.gmra.mrb[0].mxu0 %v986
          %v1054 = vpop.f32.mrb[0].mxu0
          %v1055 = vadd.f32 0.0, %v1054
          %v1056 = vpop.f32.mrb[0].mxu0
          %1057 = vdwg.mxu0
          %v1058 = vmul.f32 %v913, %v1055
          %v1060 = vlaneseq
          %v1061 = vshrl.u32 %v1060, 7
          %v1062 = vsub.s32 0, %v1061
          %v1063 = vrot.slane %v908, %v1062
          %v1065 = vadd.f32 %v1058, %v1063
          %v1066 = vsel %vm694, %v708, 0.0
          %1067 = vadd.xlane.f32.xlu0 %v1066
          %v1068 = vpop.xlane.xlu0 %1067
          %v1069 = vsel %vm694, %v709, 0.0
          %1070 = vadd.xlane.f32.xlu0 %v1069
          %v1071 = vpop.xlane.xlu0 %1070
          %v1072 = vsub.f32 %v1068, 1.0
          %v1073 = vsub.f32 %v1071, 1.0
          %v1074 = vmax.f32 %v1072, 0.0
          %v1075 = vmax.f32 %v1073, 0.0
          %v1076 = vadd.f32 %v1074, 1.0
          %v1077 = vadd.f32 %v1075, 1.0
          %v1079 = vsel %vm694, %v692, 0
          %v1082 = vsel %vm694, %v693, 0
          %1084 = vmatprep.subr.mxu0 0.0
          %1085 = vmatpush1.msra.mxu0 %v1065
          %1086 = vmatprep.subr.mxu0 0.0
          %1087 = vmatpush1.msra.mxu0 0.0
          %1088 = vmatprep.subr.mxu0 0.0
          %1089 = vmatpush1.msra.mxu0 0.0
          %1090 = vmatprep.subr.mxu0 0.0
          %1091 = vmatpush1.msra.mxu0 0.0
          %1092 = vmatprep.subr.mxu0 0.0
          %1093 = vmatpush1.msra.mxu0 0.0
          %1094 = vmatprep.subr.mxu0 0.0
          %1095 = vmatpush1.msra.mxu0 0.0
          %1096 = vmatprep.subr.mxu0 0.0
          %1097 = vmatpush1.msra.mxu0 0.0
          %1098 = vmatprep.subr.mxu0 0.0
          %1099 = vmatpush1.msra.mxu0 0.0
          %1100 = vmatprep.subr.mxu0 0.0
          %1101 = vmatpush1.msra.mxu0 0.0
          %1102 = vmatprep.subr.mxu0 0.0
          %1103 = vmatpush1.msra.mxu0 0.0
          %1104 = vmatprep.subr.mxu0 0.0
          %1105 = vmatpush1.msra.mxu0 0.0
          %1106 = vmatprep.subr.mxu0 0.0
          %1107 = vmatpush1.msra.mxu0 0.0
          %1108 = vmatprep.subr.mxu0 0.0
          %1109 = vmatpush1.msra.mxu0 0.0
          %1110 = vmatprep.subr.mxu0 0.0
          %1111 = vmatpush1.msra.mxu0 0.0
          %1112 = vmatprep.subr.mxu0 0.0
          %1113 = vmatpush1.msra.mxu0 0.0
          %1114 = vmatprep.subr.mxu0 0.0
          %1115 = vmatpush1.msra.mxu0 0.0
          %1116 = vmatprep.subr.mxu0 0.0
          %1117 = vmatpush1.msra.mxu0 0.0
          %1118 = vmatprep.subr.mxu0 0.0
          %1119 = vmatpush1.msra.mxu0 0.0
          %1120 = vmatprep.subr.mxu0 0.0
          %1121 = vmatpush1.msra.mxu0 0.0
          %1122 = vmatprep.subr.mxu0 0.0
          %1123 = vmatpush1.msra.mxu0 0.0
          %1124 = vmatprep.subr.mxu0 0.0
          %1125 = vmatpush1.msra.mxu0 0.0
          %1126 = vmatprep.subr.mxu0 0.0
          %1127 = vmatpush1.msra.mxu0 0.0
          %1128 = vmatprep.subr.mxu0 0.0
          %1129 = vmatpush1.msra.mxu0 0.0
          %1130 = vmatprep.subr.mxu0 0.0
          %1131 = vmatpush1.msra.mxu0 0.0
          %1132 = vmatprep.subr.mxu0 0.0
          %1133 = vmatpush1.msra.mxu0 0.0
          %1134 = vmatprep.subr.mxu0 0.0
          %1135 = vmatpush1.msra.mxu0 0.0
          %1136 = vmatprep.subr.mxu0 0.0
          %1137 = vmatpush1.msra.mxu0 0.0
          %1138 = vmatprep.subr.mxu0 0.0
          %1139 = vmatpush1.msra.mxu0 0.0
          %1140 = vmatprep.subr.mxu0 0.0
          %1141 = vmatpush1.msra.mxu0 0.0
          %1142 = vmatprep.subr.mxu0 0.0
          %1143 = vmatpush1.msra.mxu0 0.0
          %1144 = vmatprep.subr.mxu0 0.0
          %1145 = vmatpush1.msra.mxu0 0.0
          %1146 = vmatprep.subr.mxu0 0.0
          %1147 = vmatpush1.msra.mxu0 0.0
          %1148 = vmatprep.mubr.f32.mxu0 0.0
          %1149 = vmatmul.mubr.f32.gmra.mrb[0].mxu0 %v1079
          %v1150 = vpop.f32.mrb[0].mxu0
          %v1151 = vadd.f32 0.0, %v1150
          %v1152 = vpop.f32.mrb[0].mxu0
          %1153 = vmatprep.mubr.f32.mxu0 0.0
          %1154 = vmatmul.mubr.f32.gmra.mrb[0].mxu0 %v1082
          %v1155 = vpop.f32.mrb[0].mxu0
          %v1156 = vadd.f32 0.0, %v1155
          %v1157 = vpop.f32.mrb[0].mxu0
          %1158 = vdwg.mxu0
          %v1159 = vrcp.pop %v1076
          %v1160 = vmul.f32 %v1151, %v1159
          %v1161 = vrcp.pop %v1077
          %v1162 = vmul.f32 %v1156, %v1161
          %v1163 = vld [vmem:[%s8] sm:$0xff]
          %v1164 = vld [vmem:[%s8 + $0x8] sm:$0xff]
          %v1165 = vld [vmem:[%s8 + $0x10] sm:$0xff]
          %v1166 = vld [vmem:[%s8 + $0x18] sm:$0xff]
          %v1167 = vld [vmem:[%s9] sm:$0xff]
          %v1168 = vld [vmem:[%s9 + $0x8] sm:$0xff]
          %v1169 = vld [vmem:[%s9 + $0x10] sm:$0xff]
          %v1170 = vld [vmem:[%s9 + $0x18] sm:$0xff]
          %v1172 = vsel %vm577, %v1160, 0
          %v1175 = vsel %vm577, %v1162, 0
          %1177 = vmatprep.subr.mxu0 0.0
          %1178 = vmatpush1.msra.mxu0 %v1167
          %1179 = vmatprep.subr.mxu0 0.0
          %1180 = vmatpush1.msra.mxu0 %v1168
          %1181 = vmatprep.subr.mxu0 0.0
          %1182 = vmatpush1.msra.mxu0 %v1169
          %1183 = vmatprep.subr.mxu0 0.0
          %1184 = vmatpush1.msra.mxu0 %v1170
          %1185 = vmatprep.subr.mxu0 0.0
          %1186 = vmatpush1.msra.mxu0 0.0
          %1187 = vmatprep.subr.mxu0 0.0
          %1188 = vmatpush1.msra.mxu0 0.0
          %1189 = vmatprep.subr.mxu0 0.0
          %1190 = vmatpush1.msra.mxu0 0.0
          %1191 = vmatprep.subr.mxu0 0.0
          %1192 = vmatpush1.msra.mxu0 0.0
          %1193 = vmatprep.subr.mxu0 0.0
          %1194 = vmatpush1.msra.mxu0 0.0
          %1195 = vmatprep.subr.mxu0 0.0
          %1196 = vmatpush1.msra.mxu0 0.0
          %1197 = vmatprep.subr.mxu0 0.0
          %1198 = vmatpush1.msra.mxu0 0.0
          %1199 = vmatprep.subr.mxu0 0.0
          %1200 = vmatpush1.msra.mxu0 0.0
          %1201 = vmatprep.subr.mxu0 0.0
          %1202 = vmatpush1.msra.mxu0 0.0
          %1203 = vmatprep.subr.mxu0 0.0
          %1204 = vmatpush1.msra.mxu0 0.0
          %1205 = vmatprep.subr.mxu0 0.0
          %1206 = vmatpush1.msra.mxu0 0.0
          %1207 = vmatprep.subr.mxu0 0.0
          %1208 = vmatpush1.msra.mxu0 0.0
          %1209 = vmatprep.subr.mxu0 0.0
          %1210 = vmatpush1.msra.mxu0 0.0
          %1211 = vmatprep.subr.mxu0 0.0
          %1212 = vmatpush1.msra.mxu0 0.0
          %1213 = vmatprep.subr.mxu0 0.0
          %1214 = vmatpush1.msra.mxu0 0.0
          %1215 = vmatprep.subr.mxu0 0.0
          %1216 = vmatpush1.msra.mxu0 0.0
          %1217 = vmatprep.subr.mxu0 0.0
          %1218 = vmatpush1.msra.mxu0 0.0
          %1219 = vmatprep.subr.mxu0 0.0
          %1220 = vmatpush1.msra.mxu0 0.0
          %1221 = vmatprep.subr.mxu0 0.0
          %1222 = vmatpush1.msra.mxu0 0.0
          %1223 = vmatprep.subr.mxu0 0.0
          %1224 = vmatpush1.msra.mxu0 0.0
          %1225 = vmatprep.subr.mxu0 0.0
          %1226 = vmatpush1.msra.mxu0 0.0
          %1227 = vmatprep.subr.mxu0 0.0
          %1228 = vmatpush1.msra.mxu0 0.0
          %1229 = vmatprep.subr.mxu0 0.0
          %1230 = vmatpush1.msra.mxu0 0.0
          %1231 = vmatprep.subr.mxu0 0.0
          %1232 = vmatpush1.msra.mxu0 0.0
          %1233 = vmatprep.subr.mxu0 0.0
          %1234 = vmatpush1.msra.mxu0 0.0
          %1235 = vmatprep.subr.mxu0 0.0
          %1236 = vmatpush1.msra.mxu0 0.0
          %1237 = vmatprep.subr.mxu0 0.0
          %1238 = vmatpush1.msra.mxu0 0.0
          %1239 = vmatprep.subr.mxu0 0.0
          %1240 = vmatpush1.msra.mxu0 0.0
          %1241 = vmatprep.mubr.f32.mxu0 0.0
          %1242 = vmatmul.mubr.f32.gmra.mrb[0].mxu0 %v1172
          %v1243 = vpop.f32.mrb[0].mxu0
          %v1244 = vadd.f32 0.0, %v1243
          %v1245 = vpop.f32.mrb[0].mxu0
          %1246 = vmatprep.mubr.f32.mxu0 0.0
          %1247 = vmatmul.mubr.f32.gmra.mrb[0].mxu0 %v1175
          %v1248 = vpop.f32.mrb[0].mxu0
          %v1249 = vadd.f32 0.0, %v1248
          %v1250 = vpop.f32.mrb[0].mxu0
          %1251 = vdwg.mxu0
          %v1253 = vsel %vm577, %v690, 0
          %v1256 = vsel %vm577, %v691, 0
          %1258 = vmatprep.subr.mxu0 0.0
          %1259 = vmatpush1.msra.mxu0 %v1163
          %1260 = vmatprep.subr.mxu0 0.0
          %1261 = vmatpush1.msra.mxu0 %v1164
          %1262 = vmatprep.subr.mxu0 0.0
          %1263 = vmatpush1.msra.mxu0 %v1165
          %1264 = vmatprep.subr.mxu0 0.0
          %1265 = vmatpush1.msra.mxu0 %v1166
          %1266 = vmatprep.subr.mxu0 0.0
          %1267 = vmatpush1.msra.mxu0 0.0
          %1268 = vmatprep.subr.mxu0 0.0
          %1269 = vmatpush1.msra.mxu0 0.0
          %1270 = vmatprep.subr.mxu0 0.0
          %1271 = vmatpush1.msra.mxu0 0.0
          %1272 = vmatprep.subr.mxu0 0.0
          %1273 = vmatpush1.msra.mxu0 0.0
          %1274 = vmatprep.subr.mxu0 0.0
          %1275 = vmatpush1.msra.mxu0 0.0
          %1276 = vmatprep.subr.mxu0 0.0
          %1277 = vmatpush1.msra.mxu0 0.0
          %1278 = vmatprep.subr.mxu0 0.0
          %1279 = vmatpush1.msra.mxu0 0.0
          %1280 = vmatprep.subr.mxu0 0.0
          %1281 = vmatpush1.msra.mxu0 0.0
          %1282 = vmatprep.subr.mxu0 0.0
          %1283 = vmatpush1.msra.mxu0 0.0
          %1284 = vmatprep.subr.mxu0 0.0
          %1285 = vmatpush1.msra.mxu0 0.0
          %1286 = vmatprep.subr.mxu0 0.0
          %1287 = vmatpush1.msra.mxu0 0.0
          %1288 = vmatprep.subr.mxu0 0.0
          %1289 = vmatpush1.msra.mxu0 0.0
          %1290 = vmatprep.subr.mxu0 0.0
          %1291 = vmatpush1.msra.mxu0 0.0
          %1292 = vmatprep.subr.mxu0 0.0
          %1293 = vmatpush1.msra.mxu0 0.0
          %1294 = vmatprep.subr.mxu0 0.0
          %1295 = vmatpush1.msra.mxu0 0.0
          %1296 = vmatprep.subr.mxu0 0.0
          %1297 = vmatpush1.msra.mxu0 0.0
          %1298 = vmatprep.subr.mxu0 0.0
          %1299 = vmatpush1.msra.mxu0 0.0
          %1300 = vmatprep.subr.mxu0 0.0
          %1301 = vmatpush1.msra.mxu0 0.0
          %1302 = vmatprep.subr.mxu0 0.0
          %1303 = vmatpush1.msra.mxu0 0.0
          %1304 = vmatprep.subr.mxu0 0.0
          %1305 = vmatpush1.msra.mxu0 0.0
          %1306 = vmatprep.subr.mxu0 0.0
          %1307 = vmatpush1.msra.mxu0 0.0
          %1308 = vmatprep.subr.mxu0 0.0
          %1309 = vmatpush1.msra.mxu0 0.0
          %1310 = vmatprep.subr.mxu0 0.0
          %1311 = vmatpush1.msra.mxu0 0.0
          %1312 = vmatprep.subr.mxu0 0.0
          %1313 = vmatpush1.msra.mxu0 0.0
          %1314 = vmatprep.subr.mxu0 0.0
          %1315 = vmatpush1.msra.mxu0 0.0
          %1316 = vmatprep.subr.mxu0 0.0
          %1317 = vmatpush1.msra.mxu0 0.0
          %1318 = vmatprep.subr.mxu0 0.0
          %1319 = vmatpush1.msra.mxu0 0.0
          %1320 = vmatprep.subr.mxu0 0.0
          %1321 = vmatpush1.msra.mxu0 0.0
          %1322 = vmatprep.mubr.f32.mxu0 0.0
          %1323 = vmatmul.mubr.f32.gmra.mrb[0].mxu0 %v1253
          %v1324 = vpop.f32.mrb[0].mxu0
          %v1325 = vadd.f32 %v1244, %v1324
          %v1326 = vpop.f32.mrb[0].mxu0
          %1327 = vmatprep.mubr.f32.mxu0 0.0
          %1328 = vmatmul.mubr.f32.gmra.mrb[0].mxu0 %v1256
          %v1329 = vpop.f32.mrb[0].mxu0
          %v1330 = vadd.f32 %v1249, %v1329
          %v1331 = vpop.f32.mrb[0].mxu0
          %1332 = vdwg.mxu0
          %v1333 = vld [vmem:[#allocation4] sm:$0x1]
          %v1335 = vlaneseq
          %v1336 = vshrl.u32 %v1335, 7
          %v1337 = vsub.s32 0, %v1336
          %v1338 = vrot.slane %v1333, %v1337
          %v1340 = vadd.f32 %v1325, %v1338
          %v1341 = vadd.f32 %v1330, %v1338
          %v1342 = vxor.u32 %v1340, 2147483648
          %v1343 = vxor.u32 %v1341, 2147483648
          %v1344 = vmul.f32 %v1342, 1.442695
          %v1345 = vpow.pop %v1344
          %v1346 = vmul.f32 %v1343, 1.442695
          %v1347 = vpow.pop %v1346
          %v1348 = vadd.f32 %v1345, 1.0
          %v1349 = vadd.f32 %v1347, 1.0
          %v1350 = vrcp.pop %v1348
          %v1351 = vmul.f32 1.0, %v1350
          %v1352 = vrcp.pop %v1349
          %v1353 = vmul.f32 1.0, %v1352
          %1354 = vst.msk [vmem:[%s12] sm:$0xff] %vm659, %v1351
          %1355 = vst.msk [vmem:[%s12 + $0x8] sm:$0xff] %vm659, %v1353
          %v1356 = vmul.f32 %v1160, 0.15
          %v1357 = vmul.f32 %v1162, 0.15
          %v1358 = vadd.f32 %v690, %v1356
          %v1359 = vadd.f32 %v691, %v1357
          %v1360 = vadd.s32 %v896, 8
          %vm1361 = vcmp.eq.s32.totalorder %v1360, %v898
          %v1362 = vsel %vm1361, 1, 0
          %v1363 = vcvt.s32.f32 %v1362
          %v1364 = vld [vmem:[%s2] sm:$0xff]
          %v1365 = vld [vmem:[%s2 + $0x8] sm:$0xff]
          %v1366 = vmul.f32 %v901, 10000.0
          %v1367 = vmul.f32 %v1363, 10000.0
          %v1368 = vsub.f32 %v1364, %v1366
          %v1369 = vsub.f32 %v1365, %v1367
          %v1370 = vmax.f32 %v1368, 0.0
          %v1371 = vmax.f32 %v1369, 0.0
          %v1372 = vmul.f32 %v1363, 2.0
          %v1373 = vadd.f32 %v1370, %v902
          %v1374 = vadd.f32 %v1371, %v1372
          %v1375 = vld [vmem:[%s6] sm:$0xff]
          %v1376 = vld [vmem:[%s6 + $0x8] sm:$0xff]
          %v1377 = vld [vmem:[%s6 + $0x10] sm:$0xff]
          %v1378 = vld [vmem:[%s6 + $0x18] sm:$0xff]
          %v1379 = vld [vmem:[%s7] sm:$0x1]
          %v1380 = vand.u32 2147483647, %v1373
          %v1381 = vand.u32 2147483647, %v1374
          %v1382 = vsel %vm742, %v1380, 0.0
          %1383 = vadd.xlane.f32.xlu0 %v1382
          %v1384 = vpop.xlane.xlu0 %1383
          %v1385 = vsel %vm742, %v1381, 0.0
          %1386 = vadd.xlane.f32.xlu0 %v1385
          %v1387 = vpop.xlane.xlu0 %1386
          %v1388 = vrsqrt.pop %v1384
          %v1389 = vrsqrt.pop %v1387
          %v1391 = vsel %vm577, %v1358, 0
          %v1394 = vsel %vm577, %v1359, 0
          %1396 = vmatprep.subr.mxu0 0.0
          %1397 = vmatpush1.msra.mxu0 %v1375
          %1398 = vmatprep.subr.mxu0 0.0
          %1399 = vmatpush1.msra.mxu0 %v1376
          %1400 = vmatprep.subr.mxu0 0.0
          %1401 = vmatpush1.msra.mxu0 %v1377
          %1402 = vmatprep.subr.mxu0 0.0
          %1403 = vmatpush1.msra.mxu0 %v1378
          %1404 = vmatprep.subr.mxu0 0.0
          %1405 = vmatpush1.msra.mxu0 0.0
          %1406 = vmatprep.subr.mxu0 0.0
          %1407 = vmatpush1.msra.mxu0 0.0
          %1408 = vmatprep.subr.mxu0 0.0
          %1409 = vmatpush1.msra.mxu0 0.0
          %1410 = vmatprep.subr.mxu0 0.0
          %1411 = vmatpush1.msra.mxu0 0.0
          %1412 = vmatprep.subr.mxu0 0.0
          %1413 = vmatpush1.msra.mxu0 0.0
          %1414 = vmatprep.subr.mxu0 0.0
          %1415 = vmatpush1.msra.mxu0 0.0
          %1416 = vmatprep.subr.mxu0 0.0
          %1417 = vmatpush1.msra.mxu0 0.0
          %1418 = vmatprep.subr.mxu0 0.0
          %1419 = vmatpush1.msra.mxu0 0.0
          %1420 = vmatprep.subr.mxu0 0.0
          %1421 = vmatpush1.msra.mxu0 0.0
          %1422 = vmatprep.subr.mxu0 0.0
          %1423 = vmatpush1.msra.mxu0 0.0
          %1424 = vmatprep.subr.mxu0 0.0
          %1425 = vmatpush1.msra.mxu0 0.0
          %1426 = vmatprep.subr.mxu0 0.0
          %1427 = vmatpush1.msra.mxu0 0.0
          %1428 = vmatprep.subr.mxu0 0.0
          %1429 = vmatpush1.msra.mxu0 0.0
          %1430 = vmatprep.subr.mxu0 0.0
          %1431 = vmatpush1.msra.mxu0 0.0
          %1432 = vmatprep.subr.mxu0 0.0
          %1433 = vmatpush1.msra.mxu0 0.0
          %1434 = vmatprep.subr.mxu0 0.0
          %1435 = vmatpush1.msra.mxu0 0.0
          %1436 = vmatprep.subr.mxu0 0.0
          %1437 = vmatpush1.msra.mxu0 0.0
          %1438 = vmatprep.subr.mxu0 0.0
          %1439 = vmatpush1.msra.mxu0 0.0
          %1440 = vmatprep.subr.mxu0 0.0
          %1441 = vmatpush1.msra.mxu0 0.0
          %1442 = vmatprep.subr.mxu0 0.0
          %1443 = vmatpush1.msra.mxu0 0.0
          %1444 = vmatprep.subr.mxu0 0.0
          %1445 = vmatpush1.msra.mxu0 0.0
          %1446 = vmatprep.subr.mxu0 0.0
          %1447 = vmatpush1.msra.mxu0 0.0
          %1448 = vmatprep.subr.mxu0 0.0
          %1449 = vmatpush1.msra.mxu0 0.0
          %1450 = vmatprep.subr.mxu0 0.0
          %1451 = vmatpush1.msra.mxu0 0.0
          %1452 = vmatprep.subr.mxu0 0.0
          %1453 = vmatpush1.msra.mxu0 0.0
          %1454 = vmatprep.subr.mxu0 0.0
          %1455 = vmatpush1.msra.mxu0 0.0
          %1456 = vmatprep.subr.mxu0 0.0
          %1457 = vmatpush1.msra.mxu0 0.0
          %1458 = vmatprep.subr.mxu0 0.0
          %1459 = vmatpush1.msra.mxu0 0.0
          %1460 = vmatprep.mubr.f32.mxu0 0.0
          %1461 = vmatmul.mubr.f32.gmra.mrb[0].mxu0 %v1391
          %v1462 = vpop.f32.mrb[0].mxu0
          %v1463 = vadd.f32 0.0, %v1462
          %v1464 = vpop.f32.mrb[0].mxu0
          %1465 = vmatprep.mubr.f32.mxu0 0.0
          %1466 = vmatmul.mubr.f32.gmra.mrb[0].mxu0 %v1394
          %v1467 = vpop.f32.mrb[0].mxu0
          %v1468 = vadd.f32 0.0, %v1467
          %v1469 = vpop.f32.mrb[0].mxu0
          %1470 = vdwg.mxu0
          %v1471 = vmul.f32 %v1388, %v1463
          %v1472 = vmul.f32 %v1389, %v1468
          %v1474 = vsel %vm742, %v1373, 0
          %v1477 = vsel %vm742, %v1374, 0
          %1479 = vmatprep.subr.mxu0 0.0
          %1480 = vmatpush1.msra.mxu0 %v1471
          %1481 = vmatprep.subr.mxu0 0.0
          %1482 = vmatpush1.msra.mxu0 %v1472
          %1483 = vmatprep.subr.mxu0 0.0
          %1484 = vmatpush1.msra.mxu0 0.0
          %1485 = vmatprep.subr.mxu0 0.0
          %1486 = vmatpush1.msra.mxu0 0.0
          %1487 = vmatprep.subr.mxu0 0.0
          %1488 = vmatpush1.msra.mxu0 0.0
          %1489 = vmatprep.subr.mxu0 0.0
          %1490 = vmatpush1.msra.mxu0 0.0
          %1491 = vmatprep.subr.mxu0 0.0
          %1492 = vmatpush1.msra.mxu0 0.0
          %1493 = vmatprep.subr.mxu0 0.0
          %1494 = vmatpush1.msra.mxu0 0.0
          %1495 = vmatprep.subr.mxu0 0.0
          %1496 = vmatpush1.msra.mxu0 0.0
          %1497 = vmatprep.subr.mxu0 0.0
          %1498 = vmatpush1.msra.mxu0 0.0
          %1499 = vmatprep.subr.mxu0 0.0
          %1500 = vmatpush1.msra.mxu0 0.0
          %1501 = vmatprep.subr.mxu0 0.0
          %1502 = vmatpush1.msra.mxu0 0.0
          %1503 = vmatprep.subr.mxu0 0.0
          %1504 = vmatpush1.msra.mxu0 0.0
          %1505 = vmatprep.subr.mxu0 0.0
          %1506 = vmatpush1.msra.mxu0 0.0
          %1507 = vmatprep.subr.mxu0 0.0
          %1508 = vmatpush1.msra.mxu0 0.0
          %1509 = vmatprep.subr.mxu0 0.0
          %1510 = vmatpush1.msra.mxu0 0.0
          %1511 = vmatprep.subr.mxu0 0.0
          %1512 = vmatpush1.msra.mxu0 0.0
          %1513 = vmatprep.subr.mxu0 0.0
          %1514 = vmatpush1.msra.mxu0 0.0
          %1515 = vmatprep.subr.mxu0 0.0
          %1516 = vmatpush1.msra.mxu0 0.0
          %1517 = vmatprep.subr.mxu0 0.0
          %1518 = vmatpush1.msra.mxu0 0.0
          %1519 = vmatprep.subr.mxu0 0.0
          %1520 = vmatpush1.msra.mxu0 0.0
          %1521 = vmatprep.subr.mxu0 0.0
          %1522 = vmatpush1.msra.mxu0 0.0
          %1523 = vmatprep.subr.mxu0 0.0
          %1524 = vmatpush1.msra.mxu0 0.0
          %1525 = vmatprep.subr.mxu0 0.0
          %1526 = vmatpush1.msra.mxu0 0.0
          %1527 = vmatprep.subr.mxu0 0.0
          %1528 = vmatpush1.msra.mxu0 0.0
          %1529 = vmatprep.subr.mxu0 0.0
          %1530 = vmatpush1.msra.mxu0 0.0
          %1531 = vmatprep.subr.mxu0 0.0
          %1532 = vmatpush1.msra.mxu0 0.0
          %1533 = vmatprep.subr.mxu0 0.0
          %1534 = vmatpush1.msra.mxu0 0.0
          %1535 = vmatprep.subr.mxu0 0.0
          %1536 = vmatpush1.msra.mxu0 0.0
          %1537 = vmatprep.subr.mxu0 0.0
          %1538 = vmatpush1.msra.mxu0 0.0
          %1539 = vmatprep.subr.mxu0 0.0
          %1540 = vmatpush1.msra.mxu0 0.0
          %1541 = vmatprep.subr.mxu0 0.0
          %1542 = vmatpush1.msra.mxu0 0.0
          %1543 = vmatprep.mubr.f32.mxu0 0.0
          %1544 = vmatmul.mubr.f32.gmra.mrb[0].mxu0 %v1474
          %v1545 = vpop.f32.mrb[0].mxu0
          %v1546 = vadd.f32 0.0, %v1545
          %v1547 = vpop.f32.mrb[0].mxu0
          %1548 = vmatprep.mubr.f32.mxu0 0.0
          %1549 = vmatmul.mubr.f32.gmra.mrb[0].mxu0 %v1477
          %v1550 = vpop.f32.mrb[0].mxu0
          %v1551 = vadd.f32 0.0, %v1550
          %v1552 = vpop.f32.mrb[0].mxu0
          %1553 = vdwg.mxu0
          %v1554 = vmul.f32 %v1388, %v1546
          %v1555 = vmul.f32 %v1389, %v1551
          %v1557 = vlaneseq
          %v1558 = vshrl.u32 %v1557, 7
          %v1559 = vsub.s32 0, %v1558
          %v1560 = vrot.slane %v1379, %v1559
          %v1562 = vadd.f32 %v1554, %v1560
          %v1563 = vadd.f32 %v1555, %v1560
          %1564 = vst.msk [vmem:[#allocation5] sm:$0xff] %vm577, %v1562
          %1565 = vst.msk [vmem:[#allocation5 + $0x8] sm:$0xff] %vm577, %v1563
        $region72: #{tpu_custom_call.1} parent=63 // pred_fallthru
          _
        // Predicated region
        $region73: #{tpu_custom_call.1} parent=63 // pred_check
          %p1566 = pneg %p281
        $region74: #{tpu_custom_call.1} parent=63 // pred_check_branch
          %1568 = sbr.rel (%p1566) target = $region76
        $region75: #{tpu_custom_call.1} parent=63 // pred_region
          %s1570 = ssub.s32 256, 256
          %1571 = vsyncadd [#allocation6], %s1570
          %s1572 = sshll.u32 [#allocation5], 4
          %s1573 = int_to_ptr.vmem [resolvable:$true] %s1572
          %1578 = dma.vmem_to_hbm [thread:$0]  %s1573, 256, %s11, [#allocation6], 128, 128, 8
        $region76: #{tpu_custom_call.1} parent=63 // pred_fallthru
          _
        // Predicated region
        $region77: #{tpu_custom_call.1} parent=63 // pred_check
          %p1579 = pneg %p302
        $region78: #{tpu_custom_call.1} parent=63 // pred_check_branch
          %1581 = sbr.rel (%p1579) target = $region80
        $region79: #{tpu_custom_call.1} parent=63 // pred_region
          _
        $region80: #{tpu_custom_call.1} parent=63 // pred_fallthru
          _
        // Predicated region
        $region81: #{tpu_custom_call.1} parent=63 // pred_check
          %p1582 = pneg %p281
        $region82: #{tpu_custom_call.1} parent=63 // pred_check_branch
          %1584 = sbr.rel (%p1582) target = $region84
        $region83: #{tpu_custom_call.1} parent=63 // pred_region
          %1585 = dma.done [#allocation6], 256
        $region84: #{tpu_custom_call.1} parent=63 // pred_fallthru
          _
        // Predicated region
        $region85: #{tpu_custom_call.1} parent=63 // pred_check
          %p1586 = pneg %p302
        $region86: #{tpu_custom_call.1} parent=63 // pred_check_branch
          %1588 = sbr.rel (%p1586) target = $region88
        $region87: #{tpu_custom_call.1} parent=63 // pred_region
          _
        $region88: #{tpu_custom_call.1} parent=63 // pred_fallthru
          _
      $region64: #{tpu_custom_call.1} parent=5 // pred_fallthru
        _
      %p1589 = scmp.le.s32.totalorder 2, %s22
      // Predicated region
      $region89: #{tpu_custom_call.1} parent=5 // pred_check
        %p1590 = pneg %p1589
      $region90: #{tpu_custom_call.1} parent=5 // pred_check_branch
        %1592 = sbr.rel (%p1590) target = $region92
      $region91: #{tpu_custom_call.1} parent=5 // pred_region
        %s1593 = ssub.s32 %s22, 2
      $region92: #{tpu_custom_call.1} parent=5 // pred_fallthru
        _
    $region6: #{tpu_custom_call.1} parent=1 // loop_footer
      %s26 = sadd.s32 1, %s22
    $region7: #{tpu_custom_call.1} parent=1 // loop_footer_branch
      %21 = sbr.rel target = $region3
    $region8: #{tpu_custom_call.1} parent=1 // loop_exit
      _
    %1594 = vsyncpa [#allocation6], 1
    %s1595 = scalar_lea.sflag [#allocation6], 1
    %1596 = vsyncpa %s1595, 1

</llo_original>
